<compile_context>
chip_gen: v5e
topology: v5e:2x2
jax: 0.10.0
libtpu: 0.0.40
codegen_flags: <defaults>
</compile_context>

<pallas_src>
import functools
import math

import jax
import jax.numpy as jnp
from jax import lax
from jax.experimental import pallas as pl
from jax.experimental.pallas import tpu as pltpu


def _attend_head(qh, k_scratch, v_scratch, h_start, head_dim, *, qt, q_tile,
                 kv_tile, n_kv, causal, compute_dtype):
    """Online-softmax attention for one head of one query tile.

    qh         : (q_tile, head_dim) in compute_dtype, 1/sqrt(D) already folded in.
    k_scratch  : (S, E) VMEM ref holding the projected K for this batch element.
    v_scratch  : (S, E) VMEM ref holding the projected V.
    Returns the (q_tile, head_dim) f32 attention output for this head.
    """
    tq = q_tile
    # Causal: only KV tiles that contain at least one visible key.
    n_steps = (qt + 1) if causal else n_kv

    def body(kv, carry):
        m, l, acc = carry
        kstart = pl.multiple_of(kv * kv_tile, kv_tile)
        kh = k_scratch[pl.ds(kstart, kv_tile), pl.ds(h_start, head_dim)]
        vh = v_scratch[pl.ds(kstart, kv_tile), pl.ds(h_start, head_dim)]

        # QK^T without an explicit transpose: contract the last dims.
        s = lax.dot_general(qh, kh, (((1,), (1,)), ((), ())),
                            preferred_element_type=jnp.float32)   # (tq, tkv)
        if causal:
            q_pos = qt * tq + lax.broadcasted_iota(jnp.int32, (tq, kv_tile), 0)
            k_pos = kstart + lax.broadcasted_iota(jnp.int32, (tq, kv_tile), 1)
            # Finite sentinel; underflows to exactly 0 after the exp (and the
            # diagonal is always visible so no row is fully masked).
            s = jnp.where(k_pos <= q_pos, s, -1e30)

        m_new = jnp.maximum(m, jnp.max(s, axis=-1, keepdims=True))
        alpha = jnp.exp(m - m_new)
        p = jnp.exp(s - m_new)
        l_new = alpha * l + jnp.sum(p, axis=-1, keepdims=True)
        acc_new = alpha * acc + jnp.dot(p.astype(compute_dtype), vh,
                                        preferred_element_type=jnp.float32)
        return m_new, l_new, acc_new

    m0 = jnp.full((tq, 1), -1e30, dtype=jnp.float32)
    l0 = jnp.zeros((tq, 1), dtype=jnp.float32)
    acc0 = jnp.zeros((tq, head_dim), dtype=jnp.float32)
    m, l, acc = lax.fori_loop(0, n_steps, body, (m0, l0, acc0))

    # Exact division for the softmax normalization (approx reciprocal cost
    # ~3e-3 of absolute error vs. the PyTorch reference previously).
    return acc / l


def _self_attention_kernel(x_q_ref, x_full_ref, wq_t_ref, wk_t_ref, wv_t_ref,
                           bq_ref, bk_ref, bv_ref, w_out_t_ref, b_out_ref,
                           o_ref, k_scratch, v_scratch, attn_scratch,
                           *, num_heads, head_dim, causal, compute_dtype):
    """One (batch element, query tile) per grid step.

    x_q_ref     : (1, tq, E) VMEM  (query tile of x)
    x_full_ref  : (1, S, E)  VMEM  (full sequence; read only at qt == 0)
    wq/k/v_t    : (E, E)     VMEM  (pre-transposed per-projection weights)
    bq/bk/bv    : (1, E)     VMEM  (f32 biases)
    w_out_t_ref : (E, E)     VMEM
    b_out_ref   : (1, E)     VMEM
    o_ref       : (1, tq, E) VMEM
    k_scratch   : (S, E)     VMEM scratch (K projection, persists across q tiles)
    v_scratch   : (S, E)     VMEM scratch (V projection)
    attn_scratch: (tq, E)    VMEM scratch (lane-dense per-tile attention slab)
    """
    S = x_full_ref.shape[1]
    tq = x_q_ref.shape[1]
    n_kv = S // tq
    qt = pl.program_id(1)

    # ---- K / V projection for the whole sequence, once per batch element ----
    # NOTE: the qt axis must stay "arbitrary" — scratch is only valid after
    # the qt == 0 step of the current batch element.
    @pl.when(qt == 0)
    def _():
        x_full = x_full_ref[0].astype(compute_dtype)                   # (S, E)
        k = jnp.dot(x_full, wk_t_ref[...],
                    preferred_element_type=jnp.float32) + bk_ref[0]
        v = jnp.dot(x_full, wv_t_ref[...],
                    preferred_element_type=jnp.float32) + bv_ref[0]
        k_scratch[...] = k.astype(k_scratch.dtype)
        v_scratch[...] = v.astype(v_scratch.dtype)

    # ---- Q projection for this query tile (1/sqrt(D) folded into q) ---------
    scale = 1.0 / math.sqrt(head_dim)
    x_q = x_q_ref[0].astype(compute_dtype)                             # (tq, E)
    q = (jnp.dot(x_q, wq_t_ref[...],
                 preferred_element_type=jnp.float32) + bq_ref[0]) * scale
    q = q.astype(compute_dtype)            # MXU operands stay in compute dtype

    attend = functools.partial(_attend_head, qt=qt, q_tile=tq, kv_tile=tq,
                               n_kv=n_kv, causal=causal,
                               compute_dtype=compute_dtype)

    # fori_loop bounds live ranges for many heads; dynamic lane slices are only
    # used when they stay 128-lane aligned.
    if num_heads >= 8 and head_dim % 128 == 0:
        def head_body(h, carry):
            h_start = pl.multiple_of(h * head_dim, head_dim)
            qh = q[:, pl.ds(h_start, head_dim)]
            out_h = attend(qh, k_scratch, v_scratch, h_start, head_dim)
            attn_scratch[:, pl.ds(h_start, head_dim)] = \
                out_h.astype(attn_scratch.dtype)
            return carry
        lax.fori_loop(0, num_heads, head_body, 0)
    else:
        for h in range(num_heads):           # static unroll: tiny live state
            hs = h * head_dim
            qh = q[:, hs:hs + head_dim]
            out_h = attend(qh, k_scratch, v_scratch, hs, head_dim)
            attn_scratch[:, hs:hs + head_dim] = out_h.astype(attn_scratch.dtype)

    # ---- out_proj for this query tile (single big matmul) -------------------
    out = jnp.dot(attn_scratch[...], w_out_t_ref[...],
                  preferred_element_type=jnp.float32) + b_out_ref[0]
    o_ref[0] = out.astype(o_ref.dtype)


def _pick_q_tile(S, target):
    """Largest divisor of S that is <= target and a multiple of 8 (or S)."""
    if S <= target:
        return S
    for t in range(min(target, S), 0, -1):
        if S % t == 0 and (t % 8 == 0 or t == S):
            return t
    return S


def self_attention_pallas(x, w_in, b_in, w_out, b_out, *, num_heads,
                          causal_mask=False, q_tile=None, compute_dtype=None,
                          interpret=False):
    """x: (B, S, E); w_in: (3E, E); b_in: (3E,); w_out: (E, E); b_out: (E,)."""
    B, S, E = x.shape
    assert E % num_heads == 0
    head_dim = E // num_heads
    if compute_dtype is None:
        compute_dtype = x.dtype        # pass jnp.bfloat16 for the fast path

    if q_tile is None:
        q_tile = _pick_q_tile(S, 256)
    elif S % q_tile != 0 or (q_tile != S and q_tile % 8 != 0):
        q_tile = _pick_q_tile(S, q_tile)
    n_qt = S // q_tile

    # Pre-split / pre-transpose weights once outside the kernel (layout
    # plumbing) so the kernel never lane-slices a 3E-wide block or transposes
    # on-chip.  Biases stay f32 (added into the f32 accumulators).
    wq_t = jnp.transpose(w_in[0:E]).astype(compute_dtype)          # (E, E)
    wk_t = jnp.transpose(w_in[E:2 * E]).astype(compute_dtype)
    wv_t = jnp.transpose(w_in[2 * E:3 * E]).astype(compute_dtype)
    w_out_t = jnp.transpose(w_out).astype(compute_dtype)
    bq = b_in[0:E].reshape(1, E).astype(jnp.float32)
    bk = b_in[E:2 * E].reshape(1, E).astype(jnp.float32)
    bv = b_in[2 * E:3 * E].reshape(1, E).astype(jnp.float32)
    b_out_r = b_out.reshape(1, E).astype(jnp.float32)

    # Explicit scoped-VMEM budget sized from the actual working set (defaults
    # are only ~16 MiB on v5e / ~32 MiB on v6e/v7x).
    in_b = jnp.dtype(x.dtype).itemsize
    c_b = jnp.dtype(compute_dtype).itemsize
    working_set = (
        2 * q_tile * E * in_b          # x query tile (double buffered)
        + 2 * S * E * in_b             # full-seq x block
        + 2 * 4 * E * E * c_b          # Wq/Wk/Wv/Wout (double buffered)
        + 2 * 4 * E * 4                # biases
        + 2 * q_tile * E * in_b        # output block
        + 2 * S * E * c_b              # K / V scratch
        + q_tile * E * c_b             # attention slab
        + 2 * q_tile * q_tile * 4      # per-KV-tile score / exp temporaries
    )
    vmem_limit = int(min(64 * 1024 * 1024,
                         max(32 * 1024 * 1024, int(1.5 * working_set))))

    kernel = functools.partial(_self_attention_kernel,
                               num_heads=num_heads, head_dim=head_dim,
                               causal=causal_mask, compute_dtype=compute_dtype)

    return pl.pallas_call(
        kernel,
        out_shape=jax.ShapeDtypeStruct((B, S, E), x.dtype),
        grid=(B, n_qt),
        in_specs=[
            pl.BlockSpec((1, q_tile, E), lambda b, qt: (b, qt, 0)),  # x (Q tile)
            pl.BlockSpec((1, S, E), lambda b, qt: (b, 0, 0)),        # x (full seq, qt==0 only)
            pl.BlockSpec((E, E), lambda b, qt: (0, 0)),              # Wq^T
            pl.BlockSpec((E, E), lambda b, qt: (0, 0)),              # Wk^T
            pl.BlockSpec((E, E), lambda b, qt: (0, 0)),              # Wv^T
            pl.BlockSpec((1, E), lambda b, qt: (0, 0)),              # bq
            pl.BlockSpec((1, E), lambda b, qt: (0, 0)),              # bk
            pl.BlockSpec((1, E), lambda b, qt: (0, 0)),              # bv
            pl.BlockSpec((E, E), lambda b, qt: (0, 0)),              # W_out^T
            pl.BlockSpec((1, E), lambda b, qt: (0, 0)),              # b_out
        ],
        out_specs=pl.BlockSpec((1, q_tile, E), lambda b, qt: (b, qt, 0)),
        scratch_shapes=[
            pltpu.VMEM((S, E), compute_dtype),       # K projection
            pltpu.VMEM((S, E), compute_dtype),       # V projection
            pltpu.VMEM((q_tile, E), compute_dtype),  # lane-dense attention slab
        ],
        compiler_params=pltpu.CompilerParams(
            dimension_semantics=("parallel", "arbitrary"),
            vmem_limit_bytes=vmem_limit),
        interpret=interpret,
    )(x, x, wq_t, wk_t, wv_t, bq, bk, bv, w_out_t, b_out_r)


def self_attention_ref(x, w_in, b_in, w_out, b_out, *, num_heads,
                       causal_mask=False):
    """Pure-JAX reference mirroring the PyTorch forward."""
    B, S, E = x.shape
    D = E // num_heads
    qkv = jnp.einsum('bse,fe->bsf', x, w_in) + b_in               # (B, S, 3E)
    q, k, v = jnp.split(qkv, 3, axis=-1)
    q = q.reshape(B, S, num_heads, D).transpose(0, 2, 1, 3)       # (B, H, S, D)
    k = k.reshape(B, S, num_heads, D).transpose(0, 2, 1, 3)
    v = v.reshape(B, S, num_heads, D).transpose(0, 2, 1, 3)
    s = jnp.einsum('bhqd,bhkd->bhqk', q, k) / math.sqrt(D)
    if causal_mask:
        row = jnp.arange(S)[:, None]
        col = jnp.arange(S)[None, :]
        s = jnp.where(col <= row, s, -jnp.inf)
    p = jax.nn.softmax(s, axis=-1)
    o = jnp.einsum('bhqk,bhkd->bhqd', p, v)                       # (B, H, S, D)
    o = o.transpose(0, 2, 1, 3).reshape(B, S, E)
    return jnp.einsum('bse,fe->bsf', o, w_out) + b_out


if __name__ == "__main__":
    B, S, E, H = 2, 16, 32, 4   # S=16 with q_tile=8 exercises the q/kv tiling

    key = jax.random.PRNGKey(0)
    kx, k1, k2, k3, k4 = jax.random.split(key, 5)

    x = jax.random.normal(kx, (B, S, E), dtype=jnp.float32)
    # Deterministic synthetic parameters (PyTorch nn.Linear layout).
    w_in = jax.random.normal(k1, (3 * E, E), dtype=jnp.float32) * (1.0 / math.sqrt(E))
    b_in = jax.random.normal(k2, (3 * E,), dtype=jnp.float32) * 0.02
    w_out = jax.random.normal(k3, (E, E), dtype=jnp.float32) * (1.0 / math.sqrt(E))
    b_out = jax.random.normal(k4, (E,), dtype=jnp.float32) * 0.02

    for causal in (False, True):
        out = self_attention_pallas(x, w_in, b_in, w_out, b_out,
                                    num_heads=H, causal_mask=causal, q_tile=8)
        out = jax.block_until_ready(out)
        ref = self_attention_ref(x, w_in, b_in, w_out, b_out,
                                 num_heads=H, causal_mask=causal)
        assert out.shape == (B, S, E)
        assert jnp.allclose(out, ref, atol=1e-3, rtol=1e-3), \
            f"mismatch (causal={causal}): {jnp.max(jnp.abs(out - ref))}"

    print("KERNEL_OK")
</pallas_src>

<mosaic_0001>
module attributes {stable_mosaic.version = 11 : i64} {
  func.func @_self_attention_kernel(%arg0: i32, %arg1: i32, %arg2: memref<1x8x32xf32, #tpu.memory_space<vmem>>, %arg3: memref<1x16x32xf32, #tpu.memory_space<vmem>>, %arg4: memref<32x32xf32, #tpu.memory_space<vmem>>, %arg5: memref<32x32xf32, #tpu.memory_space<vmem>>, %arg6: memref<32x32xf32, #tpu.memory_space<vmem>>, %arg7: memref<1x32xf32, #tpu.memory_space<vmem>>, %arg8: memref<1x32xf32, #tpu.memory_space<vmem>>, %arg9: memref<1x32xf32, #tpu.memory_space<vmem>>, %arg10: memref<32x32xf32, #tpu.memory_space<vmem>>, %arg11: memref<1x32xf32, #tpu.memory_space<vmem>>, %arg12: memref<1x8x32xf32, #tpu.memory_space<vmem>>, %arg13: memref<16x32xf32, #tpu.memory_space<vmem>>, %arg14: memref<16x32xf32, #tpu.memory_space<vmem>>, %arg15: memref<8x32xf32, #tpu.memory_space<vmem>>) attributes {dimension_semantics = [#tpu.dimension_semantics<parallel>, #tpu.dimension_semantics<arbitrary>], iteration_bounds = array<i64: 2, 2>, scalar_prefetch = 0 : i64, scratch_operands = 3 : i64, tpu.core_type = #tpu.core_type<tc>, window_params = [{transform_indices = @transform_0, window_bounds = array<i64: 1, 8, 32>}, {transform_indices = @transform_1, window_bounds = array<i64: 1, 16, 32>}, {pipeline_mode = #tpu.pipeline_mode<synchronous>, transform_indices = @transform_2, window_bounds = array<i64: 32, 32>}, {pipeline_mode = #tpu.pipeline_mode<synchronous>, transform_indices = @transform_3, window_bounds = array<i64: 32, 32>}, {pipeline_mode = #tpu.pipeline_mode<synchronous>, transform_indices = @transform_4, window_bounds = array<i64: 32, 32>}, {pipeline_mode = #tpu.pipeline_mode<synchronous>, transform_indices = @transform_5, window_bounds = array<i64: 1, 32>}, {pipeline_mode = #tpu.pipeline_mode<synchronous>, transform_indices = @transform_6, window_bounds = array<i64: 1, 32>}, {pipeline_mode = #tpu.pipeline_mode<synchronous>, transform_indices = @transform_7, window_bounds = array<i64: 1, 32>}, {pipeline_mode = #tpu.pipeline_mode<synchronous>, transform_indices = @transform_8, window_bounds = array<i64: 32, 32>}, {pipeline_mode = #tpu.pipeline_mode<synchronous>, transform_indices = @transform_9, window_bounds = array<i64: 1, 32>}, {transform_indices = @transform_10, window_bounds = array<i64: 1, 8, 32>}]} {
    %c0_i32 = arith.constant 0 : i32
    %0 = arith.cmpi eq, %arg1, %c0_i32 : i32
    %1 = arith.extui %0 : i1 to i32
    %c0_i32_0 = arith.constant 0 : i32
    %2 = arith.cmpi ne, %1, %c0_i32_0 : i32
    scf.if %2 {
      %c0_49 = arith.constant 0 : index
      %c0_50 = arith.constant 0 : index
      %c0_51 = arith.constant 0 : index
      %61 = vector.load %arg3[%c0_49, %c0_50, %c0_51] : memref<1x16x32xf32, #tpu.memory_space<vmem>>, vector<1x16x32xf32>
      %62 = vector.shape_cast %61 : vector<1x16x32xf32> to vector<16x32xf32>
      %c0_52 = arith.constant 0 : index
      %c0_53 = arith.constant 0 : index
      %63 = vector.load %arg5[%c0_52, %c0_53] : memref<32x32xf32, #tpu.memory_space<vmem>>, vector<32x32xf32>
      %cst_54 = arith.constant dense<0.000000e+00> : vector<16x32xf32>
      %64 = tpu.matmul %62, %63, %cst_54 {dimension_numbers = #tpu.dot_dimension_numbers<[1], [0], [0], [1], [0, 0, 1, 1], [], []>} : vector<16x32xf32>, vector<32x32xf32>, vector<16x32xf32> -> vector<16x32xf32>
      %c0_55 = arith.constant 0 : index
      %c0_56 = arith.constant 0 : index
      %65 = vector.load %arg8[%c0_55, %c0_56] : memref<1x32xf32, #tpu.memory_space<vmem>>, vector<1x32xf32>
      %66 = vector.shape_cast %65 : vector<1x32xf32> to vector<32xf32>
      %67 = vector.shape_cast %66 : vector<32xf32> to vector<1x32xf32>
      %68 = vector.broadcast %67 : vector<1x32xf32> to vector<16x32xf32>
      %69 = arith.addf %64, %68 : vector<16x32xf32>
      %c0_57 = arith.constant 0 : index
      %c0_58 = arith.constant 0 : index
      %70 = vector.load %arg6[%c0_57, %c0_58] : memref<32x32xf32, #tpu.memory_space<vmem>>, vector<32x32xf32>
      %cst_59 = arith.constant dense<0.000000e+00> : vector<16x32xf32>
      %71 = tpu.matmul %62, %70, %cst_59 {dimension_numbers = #tpu.dot_dimension_numbers<[1], [0], [0], [1], [0, 0, 1, 1], [], []>} : vector<16x32xf32>, vector<32x32xf32>, vector<16x32xf32> -> vector<16x32xf32>
      %c0_60 = arith.constant 0 : index
      %c0_61 = arith.constant 0 : index
      %72 = vector.load %arg9[%c0_60, %c0_61] : memref<1x32xf32, #tpu.memory_space<vmem>>, vector<1x32xf32>
      %73 = vector.shape_cast %72 : vector<1x32xf32> to vector<32xf32>
      %74 = vector.shape_cast %73 : vector<32xf32> to vector<1x32xf32>
      %75 = vector.broadcast %74 : vector<1x32xf32> to vector<16x32xf32>
      %76 = arith.addf %71, %75 : vector<16x32xf32>
      %c0_62 = arith.constant 0 : index
      %c0_63 = arith.constant 0 : index
      %77 = vector.load %arg13[%c0_62, %c0_63] : memref<16x32xf32, #tpu.memory_space<vmem>>, vector<16x32xf32>
      tpu.vector_store %arg13[%c0_62, %c0_63], %69 {strides = array<i32>} : memref<16x32xf32, #tpu.memory_space<vmem>>, vector<16x32xf32>,
      %c0_64 = arith.constant 0 : index
      %c0_65 = arith.constant 0 : index
      %78 = vector.load %arg14[%c0_64, %c0_65] : memref<16x32xf32, #tpu.memory_space<vmem>>, vector<16x32xf32>
      tpu.vector_store %arg14[%c0_64, %c0_65], %76 {strides = array<i32>} : memref<16x32xf32, #tpu.memory_space<vmem>>, vector<16x32xf32>,
    } else {
    }
    %c0 = arith.constant 0 : index
    %c0_1 = arith.constant 0 : index
    %c0_2 = arith.constant 0 : index
    %3 = vector.load %arg2[%c0, %c0_1, %c0_2] : memref<1x8x32xf32, #tpu.memory_space<vmem>>, vector<1x8x32xf32>
    %4 = vector.shape_cast %3 : vector<1x8x32xf32> to vector<8x32xf32>
    %c0_3 = arith.constant 0 : index
    %c0_4 = arith.constant 0 : index
    %5 = vector.load %arg4[%c0_3, %c0_4] : memref<32x32xf32, #tpu.memory_space<vmem>>, vector<32x32xf32>
    %cst = arith.constant dense<0.000000e+00> : vector<8x32xf32>
    %6 = tpu.matmul %4, %5, %cst {dimension_numbers = #tpu.dot_dimension_numbers<[1], [0], [0], [1], [0, 0, 1, 1], [], []>} : vector<8x32xf32>, vector<32x32xf32>, vector<8x32xf32> -> vector<8x32xf32>
    %c0_5 = arith.constant 0 : index
    %c0_6 = arith.constant 0 : index
    %7 = vector.load %arg7[%c0_5, %c0_6] : memref<1x32xf32, #tpu.memory_space<vmem>>, vector<1x32xf32>
    %8 = vector.shape_cast %7 : vector<1x32xf32> to vector<32xf32>
    %9 = vector.shape_cast %8 : vector<32xf32> to vector<1x32xf32>
    %10 = vector.broadcast %9 : vector<1x32xf32> to vector<8x32xf32>
    %11 = arith.addf %6, %10 : vector<8x32xf32>
    %cst_7 = arith.constant 0.353553385 : f32
    %12 = vector.broadcast %cst_7 : f32 to vector<8x32xf32>
    %13 = arith.mulf %11, %12 : vector<8x32xf32>
    %14 = vector.extract_strided_slice %13 {offsets = [0, 0], sizes = [8, 8], strides = [1, 1]} : vector<8x32xf32> to vector<8x8xf32>
    %cst_8 = arith.constant -1.000000e+30 : f32
    %15 = vector.broadcast %cst_8 : f32 to vector<8x1xf32>
    %cst_9 = arith.constant 0.000000e+00 : f32
    %16 = vector.broadcast %cst_9 : f32 to vector<8x1xf32>
    %cst_10 = arith.constant 0.000000e+00 : f32
    %17 = vector.broadcast %cst_10 : f32 to vector<8x8xf32>
    %c0_i32_11 = arith.constant 0 : i32
    %c2_i32 = arith.constant 2 : i32
    %18 = arith.addi %c0_i32_11, %c2_i32 : i32
    %c1_i32 = arith.constant 1 : i32
    %19:3 = scf.for %arg16 = %c0_i32_11 to %18 step %c1_i32 iter_args(%arg17 = %15, %arg18 = %16, %arg19 = %17) -> (vector<8x1xf32>, vector<8x1xf32>, vector<8x8xf32>)  : i32 {
      %c8_i32 = arith.constant 8 : i32
      %61 = arith.muli %arg16, %c8_i32 : i32
      %62 = tpu.assume_multiple %61, 8 : i32
      %63 = arith.index_cast %62 : i32 to index
      %c0_49 = arith.constant 0 : index
      %64 = vector.load %arg13[%63, %c0_49] : memref<16x32xf32, #tpu.memory_space<vmem>>, vector<8x8xf32>
      %65 = arith.index_cast %62 : i32 to index
      %c0_50 = arith.constant 0 : index
      %66 = vector.load %arg14[%65, %c0_50] : memref<16x32xf32, #tpu.memory_space<vmem>>, vector<8x8xf32>
      %cst_51 = arith.constant dense<0.000000e+00> : vector<8x8xf32>
      %67 = tpu.matmul %14, %64, %cst_51 {dimension_numbers = #tpu.dot_dimension_numbers<[1], [1], [0], [0], [0, 0, 1, 0], [], []>} : vector<8x8xf32>, vector<8x8xf32>, vector<8x8xf32> -> vector<8x8xf32>
      %cst_52 = arith.constant dense<0xFF800000> : vector<8xf32>
      %68 = vector.multi_reduction <maximumf>, %67, %cst_52 [1] : vector<8x8xf32> to vector<8xf32>
      %69 = vector.shape_cast %68 : vector<8xf32> to vector<8x1xf32>
      %70 = arith.maximumf %arg17, %69 : vector<8x1xf32>
      %71 = arith.subf %arg17, %70 : vector<8x1xf32>
      %72 = math.exp %71 : vector<8x1xf32>
      %73 = vector.broadcast %70 : vector<8x1xf32> to vector<8x8xf32>
      %74 = arith.subf %67, %73 : vector<8x8xf32>
      %75 = math.exp %74 : vector<8x8xf32>
      %76 = arith.mulf %72, %arg18 : vector<8x1xf32>
      %cst_53 = arith.constant dense<0.000000e+00> : vector<8xf32>
      %77 = vector.multi_reduction <add>, %75, %cst_53 [1] : vector<8x8xf32> to vector<8xf32>
      %78 = vector.shape_cast %77 : vector<8xf32> to vector<8x1xf32>
      %79 = arith.addf %76, %78 : vector<8x1xf32>
      %80 = vector.broadcast %72 : vector<8x1xf32> to vector<8x8xf32>
      %81 = arith.mulf %80, %arg19 : vector<8x8xf32>
      %cst_54 = arith.constant dense<0.000000e+00> : vector<8x8xf32>
      %82 = tpu.matmul %75, %66, %cst_54 {dimension_numbers = #tpu.dot_dimension_numbers<[1], [0], [0], [1], [0, 0, 1, 1], [], []>} : vector<8x8xf32>, vector<8x8xf32>, vector<8x8xf32> -> vector<8x8xf32>
      %83 = arith.addf %81, %82 : vector<8x8xf32>
      scf.yield %70, %79, %83 : vector<8x1xf32>, vector<8x1xf32>, vector<8x8xf32>
    }
    %c2_i32_12 = arith.constant 2 : i32
    %20 = vector.broadcast %19#1 : vector<8x1xf32> to vector<8x8xf32>
    %21 = arith.divf %19#2, %20 : vector<8x8xf32>
    %c0_13 = arith.constant 0 : index
    %c0_14 = arith.constant 0 : index
    %22 = vector.load %arg15[%c0_13, %c0_14] : memref<8x32xf32, #tpu.memory_space<vmem>>, vector<8x8xf32>
    tpu.vector_store %arg15[%c0_13, %c0_14], %21 {strides = array<i32>} : memref<8x32xf32, #tpu.memory_space<vmem>>, vector<8x8xf32>,
    %23 = vector.extract_strided_slice %13 {offsets = [0, 8], sizes = [8, 8], strides = [1, 1]} : vector<8x32xf32> to vector<8x8xf32>
    %cst_15 = arith.constant -1.000000e+30 : f32
    %24 = vector.broadcast %cst_15 : f32 to vector<8x1xf32>
    %cst_16 = arith.constant 0.000000e+00 : f32
    %25 = vector.broadcast %cst_16 : f32 to vector<8x1xf32>
    %cst_17 = arith.constant 0.000000e+00 : f32
    %26 = vector.broadcast %cst_17 : f32 to vector<8x8xf32>
    %c0_i32_18 = arith.constant 0 : i32
    %c2_i32_19 = arith.constant 2 : i32
    %27 = arith.addi %c0_i32_18, %c2_i32_19 : i32
    %c1_i32_20 = arith.constant 1 : i32
    %28:3 = scf.for %arg16 = %c0_i32_18 to %27 step %c1_i32_20 iter_args(%arg17 = %24, %arg18 = %25, %arg19 = %26) -> (vector<8x1xf32>, vector<8x1xf32>, vector<8x8xf32>)  : i32 {
      %c8_i32 = arith.constant 8 : i32
      %61 = arith.muli %arg16, %c8_i32 : i32
      %62 = tpu.assume_multiple %61, 8 : i32
      %63 = arith.index_cast %62 : i32 to index
      %c8_49 = arith.constant 8 : index
      %64 = vector.load %arg13[%63, %c8_49] : memref<16x32xf32, #tpu.memory_space<vmem>>, vector<8x8xf32>
      %65 = arith.index_cast %62 : i32 to index
      %c8_50 = arith.constant 8 : index
      %66 = vector.load %arg14[%65, %c8_50] : memref<16x32xf32, #tpu.memory_space<vmem>>, vector<8x8xf32>
      %cst_51 = arith.constant dense<0.000000e+00> : vector<8x8xf32>
      %67 = tpu.matmul %23, %64, %cst_51 {dimension_numbers = #tpu.dot_dimension_numbers<[1], [1], [0], [0], [0, 0, 1, 0], [], []>} : vector<8x8xf32>, vector<8x8xf32>, vector<8x8xf32> -> vector<8x8xf32>
      %cst_52 = arith.constant dense<0xFF800000> : vector<8xf32>
      %68 = vector.multi_reduction <maximumf>, %67, %cst_52 [1] : vector<8x8xf32> to vector<8xf32>
      %69 = vector.shape_cast %68 : vector<8xf32> to vector<8x1xf32>
      %70 = arith.maximumf %arg17, %69 : vector<8x1xf32>
      %71 = arith.subf %arg17, %70 : vector<8x1xf32>
      %72 = math.exp %71 : vector<8x1xf32>
      %73 = vector.broadcast %70 : vector<8x1xf32> to vector<8x8xf32>
      %74 = arith.subf %67, %73 : vector<8x8xf32>
      %75 = math.exp %74 : vector<8x8xf32>
      %76 = arith.mulf %72, %arg18 : vector<8x1xf32>
      %cst_53 = arith.constant dense<0.000000e+00> : vector<8xf32>
      %77 = vector.multi_reduction <add>, %75, %cst_53 [1] : vector<8x8xf32> to vector<8xf32>
      %78 = vector.shape_cast %77 : vector<8xf32> to vector<8x1xf32>
      %79 = arith.addf %76, %78 : vector<8x1xf32>
      %80 = vector.broadcast %72 : vector<8x1xf32> to vector<8x8xf32>
      %81 = arith.mulf %80, %arg19 : vector<8x8xf32>
      %cst_54 = arith.constant dense<0.000000e+00> : vector<8x8xf32>
      %82 = tpu.matmul %75, %66, %cst_54 {dimension_numbers = #tpu.dot_dimension_numbers<[1], [0], [0], [1], [0, 0, 1, 1], [], []>} : vector<8x8xf32>, vector<8x8xf32>, vector<8x8xf32> -> vector<8x8xf32>
      %83 = arith.addf %81, %82 : vector<8x8xf32>
      scf.yield %70, %79, %83 : vector<8x1xf32>, vector<8x1xf32>, vector<8x8xf32>
    }
    %c2_i32_21 = arith.constant 2 : i32
    %29 = vector.broadcast %28#1 : vector<8x1xf32> to vector<8x8xf32>
    %30 = arith.divf %28#2, %29 : vector<8x8xf32>
    %c0_22 = arith.constant 0 : index
    %c8 = arith.constant 8 : index
    %31 = vector.load %arg15[%c0_22, %c8] : memref<8x32xf32, #tpu.memory_space<vmem>>, vector<8x8xf32>
    tpu.vector_store %arg15[%c0_22, %c8], %30 {strides = array<i32>} : memref<8x32xf32, #tpu.memory_space<vmem>>, vector<8x8xf32>,
    %32 = vector.extract_strided_slice %13 {offsets = [0, 16], sizes = [8, 8], strides = [1, 1]} : vector<8x32xf32> to vector<8x8xf32>
    %cst_23 = arith.constant -1.000000e+30 : f32
    %33 = vector.broadcast %cst_23 : f32 to vector<8x1xf32>
    %cst_24 = arith.constant 0.000000e+00 : f32
    %34 = vector.broadcast %cst_24 : f32 to vector<8x1xf32>
    %cst_25 = arith.constant 0.000000e+00 : f32
    %35 = vector.broadcast %cst_25 : f32 to vector<8x8xf32>
    %c0_i32_26 = arith.constant 0 : i32
    %c2_i32_27 = arith.constant 2 : i32
    %36 = arith.addi %c0_i32_26, %c2_i32_27 : i32
    %c1_i32_28 = arith.constant 1 : i32
    %37:3 = scf.for %arg16 = %c0_i32_26 to %36 step %c1_i32_28 iter_args(%arg17 = %33, %arg18 = %34, %arg19 = %35) -> (vector<8x1xf32>, vector<8x1xf32>, vector<8x8xf32>)  : i32 {
      %c8_i32 = arith.constant 8 : i32
      %61 = arith.muli %arg16, %c8_i32 : i32
      %62 = tpu.assume_multiple %61, 8 : i32
      %63 = arith.index_cast %62 : i32 to index
      %c16_49 = arith.constant 16 : index
      %64 = vector.load %arg13[%63, %c16_49] : memref<16x32xf32, #tpu.memory_space<vmem>>, vector<8x8xf32>
      %65 = arith.index_cast %62 : i32 to index
      %c16_50 = arith.constant 16 : index
      %66 = vector.load %arg14[%65, %c16_50] : memref<16x32xf32, #tpu.memory_space<vmem>>, vector<8x8xf32>
      %cst_51 = arith.constant dense<0.000000e+00> : vector<8x8xf32>
      %67 = tpu.matmul %32, %64, %cst_51 {dimension_numbers = #tpu.dot_dimension_numbers<[1], [1], [0], [0], [0, 0, 1, 0], [], []>} : vector<8x8xf32>, vector<8x8xf32>, vector<8x8xf32> -> vector<8x8xf32>
      %cst_52 = arith.constant dense<0xFF800000> : vector<8xf32>
      %68 = vector.multi_reduction <maximumf>, %67, %cst_52 [1] : vector<8x8xf32> to vector<8xf32>
      %69 = vector.shape_cast %68 : vector<8xf32> to vector<8x1xf32>
      %70 = arith.maximumf %arg17, %69 : vector<8x1xf32>
      %71 = arith.subf %arg17, %70 : vector<8x1xf32>
      %72 = math.exp %71 : vector<8x1xf32>
      %73 = vector.broadcast %70 : vector<8x1xf32> to vector<8x8xf32>
      %74 = arith.subf %67, %73 : vector<8x8xf32>
      %75 = math.exp %74 : vector<8x8xf32>
      %76 = arith.mulf %72, %arg18 : vector<8x1xf32>
      %cst_53 = arith.constant dense<0.000000e+00> : vector<8xf32>
      %77 = vector.multi_reduction <add>, %75, %cst_53 [1] : vector<8x8xf32> to vector<8xf32>
      %78 = vector.shape_cast %77 : vector<8xf32> to vector<8x1xf32>
      %79 = arith.addf %76, %78 : vector<8x1xf32>
      %80 = vector.broadcast %72 : vector<8x1xf32> to vector<8x8xf32>
      %81 = arith.mulf %80, %arg19 : vector<8x8xf32>
      %cst_54 = arith.constant dense<0.000000e+00> : vector<8x8xf32>
      %82 = tpu.matmul %75, %66, %cst_54 {dimension_numbers = #tpu.dot_dimension_numbers<[1], [0], [0], [1], [0, 0, 1, 1], [], []>} : vector<8x8xf32>, vector<8x8xf32>, vector<8x8xf32> -> vector<8x8xf32>
      %83 = arith.addf %81, %82 : vector<8x8xf32>
      scf.yield %70, %79, %83 : vector<8x1xf32>, vector<8x1xf32>, vector<8x8xf32>
    }
    %c2_i32_29 = arith.constant 2 : i32
    %38 = vector.broadcast %37#1 : vector<8x1xf32> to vector<8x8xf32>
    %39 = arith.divf %37#2, %38 : vector<8x8xf32>
    %c0_30 = arith.constant 0 : index
    %c16 = arith.constant 16 : index
    %40 = vector.load %arg15[%c0_30, %c16] : memref<8x32xf32, #tpu.memory_space<vmem>>, vector<8x8xf32>
    tpu.vector_store %arg15[%c0_30, %c16], %39 {strides = array<i32>} : memref<8x32xf32, #tpu.memory_space<vmem>>, vector<8x8xf32>,
    %41 = vector.extract_strided_slice %13 {offsets = [0, 24], sizes = [8, 8], strides = [1, 1]} : vector<8x32xf32> to vector<8x8xf32>
    %cst_31 = arith.constant -1.000000e+30 : f32
    %42 = vector.broadcast %cst_31 : f32 to vector<8x1xf32>
    %cst_32 = arith.constant 0.000000e+00 : f32
    %43 = vector.broadcast %cst_32 : f32 to vector<8x1xf32>
    %cst_33 = arith.constant 0.000000e+00 : f32
    %44 = vector.broadcast %cst_33 : f32 to vector<8x8xf32>
    %c0_i32_34 = arith.constant 0 : i32
    %c2_i32_35 = arith.constant 2 : i32
    %45 = arith.addi %c0_i32_34, %c2_i32_35 : i32
    %c1_i32_36 = arith.constant 1 : i32
    %46:3 = scf.for %arg16 = %c0_i32_34 to %45 step %c1_i32_36 iter_args(%arg17 = %42, %arg18 = %43, %arg19 = %44) -> (vector<8x1xf32>, vector<8x1xf32>, vector<8x8xf32>)  : i32 {
      %c8_i32 = arith.constant 8 : i32
      %61 = arith.muli %arg16, %c8_i32 : i32
      %62 = tpu.assume_multiple %61, 8 : i32
      %63 = arith.index_cast %62 : i32 to index
      %c24_49 = arith.constant 24 : index
      %64 = vector.load %arg13[%63, %c24_49] : memref<16x32xf32, #tpu.memory_space<vmem>>, vector<8x8xf32>
      %65 = arith.index_cast %62 : i32 to index
      %c24_50 = arith.constant 24 : index
      %66 = vector.load %arg14[%65, %c24_50] : memref<16x32xf32, #tpu.memory_space<vmem>>, vector<8x8xf32>
      %cst_51 = arith.constant dense<0.000000e+00> : vector<8x8xf32>
      %67 = tpu.matmul %41, %64, %cst_51 {dimension_numbers = #tpu.dot_dimension_numbers<[1], [1], [0], [0], [0, 0, 1, 0], [], []>} : vector<8x8xf32>, vector<8x8xf32>, vector<8x8xf32> -> vector<8x8xf32>
      %cst_52 = arith.constant dense<0xFF800000> : vector<8xf32>
      %68 = vector.multi_reduction <maximumf>, %67, %cst_52 [1] : vector<8x8xf32> to vector<8xf32>
      %69 = vector.shape_cast %68 : vector<8xf32> to vector<8x1xf32>
      %70 = arith.maximumf %arg17, %69 : vector<8x1xf32>
      %71 = arith.subf %arg17, %70 : vector<8x1xf32>
      %72 = math.exp %71 : vector<8x1xf32>
      %73 = vector.broadcast %70 : vector<8x1xf32> to vector<8x8xf32>
      %74 = arith.subf %67, %73 : vector<8x8xf32>
      %75 = math.exp %74 : vector<8x8xf32>
      %76 = arith.mulf %72, %arg18 : vector<8x1xf32>
      %cst_53 = arith.constant dense<0.000000e+00> : vector<8xf32>
      %77 = vector.multi_reduction <add>, %75, %cst_53 [1] : vector<8x8xf32> to vector<8xf32>
      %78 = vector.shape_cast %77 : vector<8xf32> to vector<8x1xf32>
      %79 = arith.addf %76, %78 : vector<8x1xf32>
      %80 = vector.broadcast %72 : vector<8x1xf32> to vector<8x8xf32>
      %81 = arith.mulf %80, %arg19 : vector<8x8xf32>
      %cst_54 = arith.constant dense<0.000000e+00> : vector<8x8xf32>
      %82 = tpu.matmul %75, %66, %cst_54 {dimension_numbers = #tpu.dot_dimension_numbers<[1], [0], [0], [1], [0, 0, 1, 1], [], []>} : vector<8x8xf32>, vector<8x8xf32>, vector<8x8xf32> -> vector<8x8xf32>
      %83 = arith.addf %81, %82 : vector<8x8xf32>
      scf.yield %70, %79, %83 : vector<8x1xf32>, vector<8x1xf32>, vector<8x8xf32>
    }
    %c2_i32_37 = arith.constant 2 : i32
    %47 = vector.broadcast %46#1 : vector<8x1xf32> to vector<8x8xf32>
    %48 = arith.divf %46#2, %47 : vector<8x8xf32>
    %c0_38 = arith.constant 0 : index
    %c24 = arith.constant 24 : index
    %49 = vector.load %arg15[%c0_38, %c24] : memref<8x32xf32, #tpu.memory_space<vmem>>, vector<8x8xf32>
    tpu.vector_store %arg15[%c0_38, %c24], %48 {strides = array<i32>} : memref<8x32xf32, #tpu.memory_space<vmem>>, vector<8x8xf32>,
    %c0_39 = arith.constant 0 : index
    %c0_40 = arith.constant 0 : index
    %50 = vector.load %arg15[%c0_39, %c0_40] : memref<8x32xf32, #tpu.memory_space<vmem>>, vector<8x32xf32>
    %c0_41 = arith.constant 0 : index
    %c0_42 = arith.constant 0 : index
    %51 = vector.load %arg10[%c0_41, %c0_42] : memref<32x32xf32, #tpu.memory_space<vmem>>, vector<32x32xf32>
    %cst_43 = arith.constant dense<0.000000e+00> : vector<8x32xf32>
    %52 = tpu.matmul %50, %51, %cst_43 {dimension_numbers = #tpu.dot_dimension_numbers<[1], [0], [0], [1], [0, 0, 1, 1], [], []>} : vector<8x32xf32>, vector<32x32xf32>, vector<8x32xf32> -> vector<8x32xf32>
    %c0_44 = arith.constant 0 : index
    %c0_45 = arith.constant 0 : index
    %53 = vector.load %arg11[%c0_44, %c0_45] : memref<1x32xf32, #tpu.memory_space<vmem>>, vector<1x32xf32>
    %54 = vector.shape_cast %53 : vector<1x32xf32> to vector<32xf32>
    %55 = vector.shape_cast %54 : vector<32xf32> to vector<1x32xf32>
    %56 = vector.broadcast %55 : vector<1x32xf32> to vector<8x32xf32>
    %57 = arith.addf %52, %56 : vector<8x32xf32>
    %c0_46 = arith.constant 0 : index
    %c0_47 = arith.constant 0 : index
    %c0_48 = arith.constant 0 : index
    %58 = vector.load %arg12[%c0_46, %c0_47, %c0_48] : memref<1x8x32xf32, #tpu.memory_space<vmem>>, vector<1x8x32xf32>
    %59 = vector.shape_cast %58 : vector<1x8x32xf32> to vector<8x32xf32>
    %60 = vector.shape_cast %57 : vector<8x32xf32> to vector<1x8x32xf32>
    tpu.vector_store %arg12[%c0_46, %c0_47, %c0_48], %60 {strides = array<i32>} : memref<1x8x32xf32, #tpu.memory_space<vmem>>, vector<1x8x32xf32>,
    return
  }
  func.func @transform_0(%arg0: i32, %arg1: i32) -> (i32, i32, i32) {
    %c0_i32 = arith.constant 0 : i32
    %c0_i32_0 = arith.constant 0 : i32
    return %arg0, %arg1, %c0_i32 : i32, i32, i32
  }
  func.func @transform_1(%arg0: i32, %arg1: i32) -> (i32, i32, i32) {
    %c0_i32 = arith.constant 0 : i32
    %c0_i32_0 = arith.constant 0 : i32
    %c0_i32_1 = arith.constant 0 : i32
    return %arg0, %c0_i32, %c0_i32_0 : i32, i32, i32
  }
  func.func @transform_2(%arg0: i32, %arg1: i32) -> (i32, i32) {
    %c0_i32 = arith.constant 0 : i32
    %c0_i32_0 = arith.constant 0 : i32
    %c0_i32_1 = arith.constant 0 : i32
    return %c0_i32, %c0_i32_0 : i32, i32
  }
  func.func @transform_3(%arg0: i32, %arg1: i32) -> (i32, i32) {
    %c0_i32 = arith.constant 0 : i32
    %c0_i32_0 = arith.constant 0 : i32
    %c0_i32_1 = arith.constant 0 : i32
    return %c0_i32, %c0_i32_0 : i32, i32
  }
  func.func @transform_4(%arg0: i32, %arg1: i32) -> (i32, i32) {
    %c0_i32 = arith.constant 0 : i32
    %c0_i32_0 = arith.constant 0 : i32
    %c0_i32_1 = arith.constant 0 : i32
    return %c0_i32, %c0_i32_0 : i32, i32
  }
  func.func @transform_5(%arg0: i32, %arg1: i32) -> (i32, i32) {
    %c0_i32 = arith.constant 0 : i32
    %c0_i32_0 = arith.constant 0 : i32
    %c0_i32_1 = arith.constant 0 : i32
    return %c0_i32, %c0_i32_0 : i32, i32
  }
  func.func @transform_6(%arg0: i32, %arg1: i32) -> (i32, i32) {
    %c0_i32 = arith.constant 0 : i32
    %c0_i32_0 = arith.constant 0 : i32
    %c0_i32_1 = arith.constant 0 : i32
    return %c0_i32, %c0_i32_0 : i32, i32
  }
  func.func @transform_7(%arg0: i32, %arg1: i32) -> (i32, i32) {
    %c0_i32 = arith.constant 0 : i32
    %c0_i32_0 = arith.constant 0 : i32
    %c0_i32_1 = arith.constant 0 : i32
    return %c0_i32, %c0_i32_0 : i32, i32
  }
  func.func @transform_8(%arg0: i32, %arg1: i32) -> (i32, i32) {
    %c0_i32 = arith.constant 0 : i32
    %c0_i32_0 = arith.constant 0 : i32
    %c0_i32_1 = arith.constant 0 : i32
    return %c0_i32, %c0_i32_0 : i32, i32
  }
  func.func @transform_9(%arg0: i32, %arg1: i32) -> (i32, i32) {
    %c0_i32 = arith.constant 0 : i32
    %c0_i32_0 = arith.constant 0 : i32
    %c0_i32_1 = arith.constant 0 : i32
    return %c0_i32, %c0_i32_0 : i32, i32
  }
  func.func @transform_10(%arg0: i32, %arg1: i32) -> (i32, i32, i32) {
    %c0_i32 = arith.constant 0 : i32
    %c0_i32_0 = arith.constant 0 : i32
    return %arg0, %arg1, %c0_i32 : i32, i32, i32
  }
}

</mosaic_0001>

<llo_original>
// kernel: tpu_custom_call.1
$region0: #{tpu_custom_call.1}
  #allocation0 [shape = 'u32[]', space=smem, size = 0x4, offset = 0x4, fixed_abs, tag = 'smem constant byte address 0x4 - core index']
  #allocation1 [shape = 'u32[72,128]{1,0:T(1,128)}', space=vmem, size = 0x9000, scoped, tag = 'internal scratch']
  #allocation2 [shape = 'f32[16,32]{1,0:T(8,128)}', space=vmem, size = 0x2000, scoped, tag = 'scratch operand']
  #allocation3 [shape = 'f32[16,32]{1,0:T(8,128)}', space=vmem, size = 0x2000, scoped, tag = 'scratch operand']
  #allocation4 [shape = 'f32[8,32]{1,0:T(8,128)}', space=vmem, size = 0x1000, scoped, tag = 'scratch operand']
  %s0 = inlined_call_operand.hbm [shape: f32[2,16,32], index: 0, kind: input, shape index: {}]
  %s1 = inlined_call_operand.hbm [shape: f32[2,16,32], index: 1, kind: input, shape index: {}]
  %s2 = inlined_call_operand.hbm [shape: f32[32,32], index: 2, kind: input, shape index: {}]
  %s3 = inlined_call_operand.hbm [shape: f32[32,32], index: 3, kind: input, shape index: {}]
  %s4 = inlined_call_operand.hbm [shape: f32[32,32], index: 4, kind: input, shape index: {}]
  %s5 = inlined_call_operand.vmem [shape: f32[1,32], index: 5, kind: input, shape index: {}]
  %s6 = inlined_call_operand.vmem [shape: f32[1,32], index: 6, kind: input, shape index: {}]
  %s7 = inlined_call_operand.vmem [shape: f32[1,32], index: 7, kind: input, shape index: {}]
  %s8 = inlined_call_operand.hbm [shape: f32[32,32], index: 8, kind: input, shape index: {}]
  %s9 = inlined_call_operand.vmem [shape: f32[1,32], index: 9, kind: input, shape index: {}]
  %s10 = inlined_call_operand.hbm [shape: f32[2,16,32], index: 10, kind: output, shape index: {}]
  %s11 = sld [smem:[#allocation0]]
  $region129: #{tpu_custom_call.1} parent=0
    _
  %s13 = ssub.s32 1, %s11
  %s14 = scalar_select 0, %s13, %s11
  $region1: #{tpu_custom_call.1} parent=0
    #allocation5 [shape = 'u8[8192]{0}', space=vmem, size = 0x2000, scoped, tag = 'input window, operand 0']
    #allocation6 [shape = 's32[2]{0}', space=sflag, size = 0x8, scoped, tag = 'scoped memory for tpu_custom_call.1']
    #allocation7 [shape = 's32[2]{0}', space=sflag, size = 0x8, scoped, tag = 'scoped memory for tpu_custom_call.1']
    #allocation8 [shape = 'u8[16384]{0}', space=vmem, size = 0x4000, scoped, tag = 'input window, operand 1']
    #allocation9 [shape = 's32[2]{0}', space=sflag, size = 0x8, scoped, tag = 'scoped memory for tpu_custom_call.1']
    #allocation10 [shape = 'u8[16384]{0}', space=vmem, size = 0x4000, scoped, tag = 'input window, operand 2, single buffered']
    #allocation11 [shape = 'u8[16384]{0}', space=vmem, size = 0x4000, scoped, tag = 'input window, operand 3, single buffered']
    #allocation12 [shape = 's32[1]{0}', space=sflag, size = 0x4, scoped, tag = 'scoped memory for tpu_custom_call.1']
    #allocation13 [shape = 'u8[16384]{0}', space=vmem, size = 0x4000, scoped, tag = 'input window, operand 4, single buffered']
    #allocation14 [shape = 'u8[16384]{0}', space=vmem, size = 0x4000, scoped, tag = 'input window, operand 8, single buffered']
    #allocation15 [shape = 's32[1]{0}', space=sflag, size = 0x4, scoped, tag = 'scoped memory for tpu_custom_call.1']
    #allocation16 [shape = 'u8[8192]{0}', space=vmem, size = 0x2000, scoped, tag = 'output window, operand 0']
    %15 = vsyncpa [#allocation6], 0
    %s16 = scalar_lea.sflag [#allocation6], 1
    %17 = vsyncpa %s16, 0
    %18 = vsyncpa [#allocation9], 0
    %s19 = scalar_lea.sflag [#allocation9], 1
    %20 = vsyncpa %s19, 0
    %21 = vsyncpa [#allocation12], 0
    %22 = vsyncpa [#allocation15], 0
    %23 = vsyncpa [#allocation7], 0
    %s24 = scalar_lea.sflag [#allocation7], 1
    %25 = vsyncpa %s24, 0
    loop: start=0, step=1, limit=6
    $region2: #{tpu_custom_call.1} parent=1 // loop_pre_header
      _
    $region3: #{tpu_custom_call.1} parent=1 // loop_header
      %s27 = sphi 0, %s31
      %p28 = scmp.ge.s32.totalorder %s27, 6
      %s34 = sphi 0, %s46
      %s35 = sphi 0, %s42
      %s36 = sphi 0, %s34
      %s37 = sphi 0, %s35
      %s38 = sphi 0, %s36
      %s39 = sphi 0, %s37
      %s51 = sphi 0, %s53
      %s54 = sphi 0, %s51
      %s55 = sphi 0, %s54
      %s71 = sphi 0, %s55
      %s77 = sphi 0, %s79
      %s80 = sphi 0, %s77
      %s81 = sphi 0, %s80
      %s97 = sphi 0, %s81
      %s101 = sphi 0, %s101
      %s103 = sphi 0, %s101
      %s104 = sphi 0, %s103
      %s118 = sphi 0, %s104
      %s122 = sphi 0, %s122
      %s124 = sphi 0, %s122
      %s125 = sphi 0, %s124
      %s139 = sphi 0, %s125
      %s143 = sphi 0, %s143
      %s145 = sphi 0, %s143
      %s146 = sphi 0, %s145
      %s160 = sphi 0, %s146
      %s164 = sphi 0, %s164
      %s166 = sphi 0, %s164
      %s167 = sphi 0, %s166
      %s181 = sphi 0, %s167
      %s185 = sphi 0, %s185
      %s187 = sphi 0, %s185
      %s188 = sphi 0, %s187
      %s202 = sphi 0, %s188
      %s206 = sphi 0, %s206
      %s208 = sphi 0, %s206
      %s209 = sphi 0, %s208
      %s223 = sphi 0, %s209
      %s227 = sphi 0, %s227
      %s229 = sphi 0, %s227
      %s230 = sphi 0, %s229
      %s244 = sphi 0, %s230
      %s248 = sphi 0, %s248
      %s250 = sphi 0, %s248
      %s251 = sphi 0, %s250
      %s265 = sphi 0, %s251
      %s273 = sphi 0, %s275
      %s276 = sphi 0, %s273
      %s277 = sphi 0, %s276
      %s293 = sphi 0, %s277
    $region4: #{tpu_custom_call.1} parent=1 // loop_header_branch
      %30 = sbr.rel (%p28) target = $region8
    $region5: #{tpu_custom_call.1} parent=1 // loop_body
      %s32 = ssub.s32 %s27, 1
      %s33 = ssub.s32 %s27, 2
      %s40 = sadd.s32 1, %s35
      %p41 = scmp.ge.s32.totalorder %s40, 2
      %s42 = scalar_select %p41, 0, %s40
      %s43 = sadd.s32 1, %s34
      %s44 = scalar_select %p41, %s43, %s34
      %p45 = scmp.ge.s32.totalorder %s44, 2
      %s46 = scalar_select %p45, 0, %s44
      %s47 = ssub.s32 %s34, %s46
      %s48 = ssub.s32 %s35, %s42
      %s49 = sor.u32 %s47, %s48
      %p50 = scmp.eq.s32.totalorder %s49, 0
      %s52 = sadd.s32 %s51, 1
      %s53 = scalar_select %p50, %s51, %s52
      %p56 = pneg %p50
      %p57 = scmp.eq.s32.totalorder %s27, 3
      %p58 = por %p56, %p57
      %p59 = scmp.ne.s32.totalorder %s51, %s54
      %p60 = scmp.eq.s32.totalorder %s27, 0
      %p61 = por %p59, %p60
      %p62 = scmp.ne.s32.totalorder %s51, %s54
      %p63 = scmp.eq.s32.totalorder %s32, 3
      %p64 = por %p62, %p63
      %p65 = scmp.ne.s32.totalorder %s54, %s55
      %p66 = scmp.eq.s32.totalorder %s32, 0
      %p67 = por %p65, %p66
      %p68 = scmp.ne.s32.totalorder %s54, %s55
      %p69 = scmp.eq.s32.totalorder %s33, 3
      %p70 = por %p68, %p69
      %p72 = scmp.ne.s32.totalorder %s55, %s71
      %p73 = scmp.eq.s32.totalorder %s33, 0
      %p74 = por %p72, %p73
      %s75 = ssub.s32 %s34, %s46
      %p76 = scmp.eq.s32.totalorder %s75, 0
      %s78 = sadd.s32 %s77, 1
      %s79 = scalar_select %p76, %s77, %s78
      %p82 = pneg %p76
      %p83 = scmp.eq.s32.totalorder %s27, 3
      %p84 = por %p82, %p83
      %p85 = scmp.ne.s32.totalorder %s77, %s80
      %p86 = scmp.eq.s32.totalorder %s27, 0
      %p87 = por %p85, %p86
      %p88 = scmp.ne.s32.totalorder %s77, %s80
      %p89 = scmp.eq.s32.totalorder %s32, 3
      %p90 = por %p88, %p89
      %p91 = scmp.ne.s32.totalorder %s80, %s81
      %p92 = scmp.eq.s32.totalorder %s32, 0
      %p93 = por %p91, %p92
      %p94 = scmp.ne.s32.totalorder %s80, %s81
      %p95 = scmp.eq.s32.totalorder %s33, 3
      %p96 = por %p94, %p95
      %p98 = scmp.ne.s32.totalorder %s81, %s97
      %p99 = scmp.eq.s32.totalorder %s33, 0
      %p100 = por %p98, %p99
      %s102 = sadd.s32 %s101, 1
      %p105 = scmp.eq.s32.totalorder %s27, 3
      %p106 = scmp.ne.s32.totalorder %s101, %s103
      %p107 = scmp.eq.s32.totalorder %s27, 0
      %p108 = por %p106, %p107
      %p109 = scmp.ne.s32.totalorder %s101, %s103
      %p110 = scmp.eq.s32.totalorder %s32, 3
      %p111 = por %p109, %p110
      %p112 = scmp.ne.s32.totalorder %s103, %s104
      %p113 = scmp.eq.s32.totalorder %s32, 0
      %p114 = por %p112, %p113
      %p115 = scmp.ne.s32.totalorder %s103, %s104
      %p116 = scmp.eq.s32.totalorder %s33, 3
      %p117 = por %p115, %p116
      %p119 = scmp.ne.s32.totalorder %s104, %s118
      %p120 = scmp.eq.s32.totalorder %s33, 0
      %p121 = por %p119, %p120
      %s123 = sadd.s32 %s122, 1
      %p126 = scmp.eq.s32.totalorder %s27, 3
      %p127 = scmp.ne.s32.totalorder %s122, %s124
      %p128 = scmp.eq.s32.totalorder %s27, 0
      %p129 = por %p127, %p128
      %p130 = scmp.ne.s32.totalorder %s122, %s124
      %p131 = scmp.eq.s32.totalorder %s32, 3
      %p132 = por %p130, %p131
      %p133 = scmp.ne.s32.totalorder %s124, %s125
      %p134 = scmp.eq.s32.totalorder %s32, 0
      %p135 = por %p133, %p134
      %p136 = scmp.ne.s32.totalorder %s124, %s125
      %p137 = scmp.eq.s32.totalorder %s33, 3
      %p138 = por %p136, %p137
      %p140 = scmp.ne.s32.totalorder %s125, %s139
      %p141 = scmp.eq.s32.totalorder %s33, 0
      %p142 = por %p140, %p141
      %s144 = sadd.s32 %s143, 1
      %p147 = scmp.eq.s32.totalorder %s27, 3
      %p148 = scmp.ne.s32.totalorder %s143, %s145
      %p149 = scmp.eq.s32.totalorder %s27, 0
      %p150 = por %p148, %p149
      %p151 = scmp.ne.s32.totalorder %s143, %s145
      %p152 = scmp.eq.s32.totalorder %s32, 3
      %p153 = por %p151, %p152
      %p154 = scmp.ne.s32.totalorder %s145, %s146
      %p155 = scmp.eq.s32.totalorder %s32, 0
      %p156 = por %p154, %p155
      %p157 = scmp.ne.s32.totalorder %s145, %s146
      %p158 = scmp.eq.s32.totalorder %s33, 3
      %p159 = por %p157, %p158
      %p161 = scmp.ne.s32.totalorder %s146, %s160
      %p162 = scmp.eq.s32.totalorder %s33, 0
      %p163 = por %p161, %p162
      %s165 = sadd.s32 %s164, 1
      %p168 = scmp.eq.s32.totalorder %s27, 3
      %p169 = scmp.ne.s32.totalorder %s164, %s166
      %p170 = scmp.eq.s32.totalorder %s27, 0
      %p171 = por %p169, %p170
      %p172 = scmp.ne.s32.totalorder %s164, %s166
      %p173 = scmp.eq.s32.totalorder %s32, 3
      %p174 = por %p172, %p173
      %p175 = scmp.ne.s32.totalorder %s166, %s167
      %p176 = scmp.eq.s32.totalorder %s32, 0
      %p177 = por %p175, %p176
      %p178 = scmp.ne.s32.totalorder %s166, %s167
      %p179 = scmp.eq.s32.totalorder %s33, 3
      %p180 = por %p178, %p179
      %p182 = scmp.ne.s32.totalorder %s167, %s181
      %p183 = scmp.eq.s32.totalorder %s33, 0
      %p184 = por %p182, %p183
      %s186 = sadd.s32 %s185, 1
      %p189 = scmp.eq.s32.totalorder %s27, 3
      %p190 = scmp.ne.s32.totalorder %s185, %s187
      %p191 = scmp.eq.s32.totalorder %s27, 0
      %p192 = por %p190, %p191
      %p193 = scmp.ne.s32.totalorder %s185, %s187
      %p194 = scmp.eq.s32.totalorder %s32, 3
      %p195 = por %p193, %p194
      %p196 = scmp.ne.s32.totalorder %s187, %s188
      %p197 = scmp.eq.s32.totalorder %s32, 0
      %p198 = por %p196, %p197
      %p199 = scmp.ne.s32.totalorder %s187, %s188
      %p200 = scmp.eq.s32.totalorder %s33, 3
      %p201 = por %p199, %p200
      %p203 = scmp.ne.s32.totalorder %s188, %s202
      %p204 = scmp.eq.s32.totalorder %s33, 0
      %p205 = por %p203, %p204
      %s207 = sadd.s32 %s206, 1
      %p210 = scmp.eq.s32.totalorder %s27, 3
      %p211 = scmp.ne.s32.totalorder %s206, %s208
      %p212 = scmp.eq.s32.totalorder %s27, 0
      %p213 = por %p211, %p212
      %p214 = scmp.ne.s32.totalorder %s206, %s208
      %p215 = scmp.eq.s32.totalorder %s32, 3
      %p216 = por %p214, %p215
      %p217 = scmp.ne.s32.totalorder %s208, %s209
      %p218 = scmp.eq.s32.totalorder %s32, 0
      %p219 = por %p217, %p218
      %p220 = scmp.ne.s32.totalorder %s208, %s209
      %p221 = scmp.eq.s32.totalorder %s33, 3
      %p222 = por %p220, %p221
      %p224 = scmp.ne.s32.totalorder %s209, %s223
      %p225 = scmp.eq.s32.totalorder %s33, 0
      %p226 = por %p224, %p225
      %s228 = sadd.s32 %s227, 1
      %p231 = scmp.eq.s32.totalorder %s27, 3
      %p232 = scmp.ne.s32.totalorder %s227, %s229
      %p233 = scmp.eq.s32.totalorder %s27, 0
      %p234 = por %p232, %p233
      %p235 = scmp.ne.s32.totalorder %s227, %s229
      %p236 = scmp.eq.s32.totalorder %s32, 3
      %p237 = por %p235, %p236
      %p238 = scmp.ne.s32.totalorder %s229, %s230
      %p239 = scmp.eq.s32.totalorder %s32, 0
      %p240 = por %p238, %p239
      %p241 = scmp.ne.s32.totalorder %s229, %s230
      %p242 = scmp.eq.s32.totalorder %s33, 3
      %p243 = por %p241, %p242
      %p245 = scmp.ne.s32.totalorder %s230, %s244
      %p246 = scmp.eq.s32.totalorder %s33, 0
      %p247 = por %p245, %p246
      %s249 = sadd.s32 %s248, 1
      %p252 = scmp.eq.s32.totalorder %s27, 3
      %p253 = scmp.ne.s32.totalorder %s248, %s250
      %p254 = scmp.eq.s32.totalorder %s27, 0
      %p255 = por %p253, %p254
      %p256 = scmp.ne.s32.totalorder %s248, %s250
      %p257 = scmp.eq.s32.totalorder %s32, 3
      %p258 = por %p256, %p257
      %p259 = scmp.ne.s32.totalorder %s250, %s251
      %p260 = scmp.eq.s32.totalorder %s32, 0
      %p261 = por %p259, %p260
      %p262 = scmp.ne.s32.totalorder %s250, %s251
      %p263 = scmp.eq.s32.totalorder %s33, 3
      %p264 = por %p262, %p263
      %p266 = scmp.ne.s32.totalorder %s251, %s265
      %p267 = scmp.eq.s32.totalorder %s33, 0
      %p268 = por %p266, %p267
      %s269 = ssub.s32 %s34, %s46
      %s270 = ssub.s32 %s35, %s42
      %s271 = sor.u32 %s269, %s270
      %p272 = scmp.eq.s32.totalorder %s271, 0
      %s274 = sadd.s32 %s273, 1
      %s275 = scalar_select %p272, %s273, %s274
      %p278 = pneg %p272
      %p279 = scmp.eq.s32.totalorder %s27, 3
      %p280 = por %p278, %p279
      %p281 = scmp.ne.s32.totalorder %s273, %s276
      %p282 = scmp.eq.s32.totalorder %s27, 0
      %p283 = por %p281, %p282
      %p284 = scmp.ne.s32.totalorder %s273, %s276
      %p285 = scmp.eq.s32.totalorder %s32, 3
      %p286 = por %p284, %p285
      %p287 = scmp.ne.s32.totalorder %s276, %s277
      %p288 = scmp.eq.s32.totalorder %s32, 0
      %p289 = por %p287, %p288
      %p290 = scmp.ne.s32.totalorder %s276, %s277
      %p291 = scmp.eq.s32.totalorder %s33, 3
      %p292 = por %p290, %p291
      %p294 = scmp.ne.s32.totalorder %s277, %s293
      %p295 = scmp.eq.s32.totalorder %s33, 0
      %p296 = por %p294, %p295
      %p297 = scmp.le.s32.totalorder 1, %s27
      %p298 = scmp.lt.s32.totalorder %s27, 5
      %p299 = pnand %p297, %p298
      %p300 = pneg %p299
      // Predicated region
      $region9: #{tpu_custom_call.1} parent=5 // pred_check
        _
      $region10: #{tpu_custom_call.1} parent=5 // pred_check_branch
        %302 = sbr.rel (%p299) target = $region12
      $region11: #{tpu_custom_call.1} parent=5 // pred_region
        %s303 = ssub.s32 %s27, 1
        // Predicated region
        $region13: #{tpu_custom_call.1} parent=11 // pred_check
          %p304 = pneg %p114
        $region14: #{tpu_custom_call.1} parent=11 // pred_check_branch
          %306 = sbr.rel (%p304) target = $region16
        $region15: #{tpu_custom_call.1} parent=11 // pred_region
          %308 = vsyncadd [#allocation9], 0
          %s309 = sshll.u32 %s2, 4
          %s310 = int_to_ptr.hbm [resolvable:$true] %s309
          %s311 = sshll.u32 [#allocation10], 4
          %s312 = int_to_ptr.vmem [resolvable:$true] %s311
          %317 = dma.hbm_to_vmem [thread:$0]  %s310, 512, %s312, [#allocation9], 128, 128, 8
        $region16: #{tpu_custom_call.1} parent=11 // pred_fallthru
          _
        // Predicated region
        $region17: #{tpu_custom_call.1} parent=11 // pred_check
          %p318 = pneg %p135
        $region18: #{tpu_custom_call.1} parent=11 // pred_check_branch
          %320 = sbr.rel (%p318) target = $region20
        $region19: #{tpu_custom_call.1} parent=11 // pred_region
          %322 = vsyncadd [#allocation12], 0
          %s323 = sshll.u32 %s3, 4
          %s324 = int_to_ptr.hbm [resolvable:$true] %s323
          %s325 = sshll.u32 [#allocation11], 4
          %s326 = int_to_ptr.vmem [resolvable:$true] %s325
          %331 = dma.hbm_to_vmem [thread:$0]  %s324, 512, %s326, [#allocation12], 128, 128, 8
        $region20: #{tpu_custom_call.1} parent=11 // pred_fallthru
          _
        // Predicated region
        $region21: #{tpu_custom_call.1} parent=11 // pred_check
          %p332 = pneg %p156
        $region22: #{tpu_custom_call.1} parent=11 // pred_check_branch
          %334 = sbr.rel (%p332) target = $region24
        $region23: #{tpu_custom_call.1} parent=11 // pred_region
          %336 = vsyncadd [#allocation12], 0
          %s337 = sshll.u32 %s4, 4
          %s338 = int_to_ptr.hbm [resolvable:$true] %s337
          %s339 = sshll.u32 [#allocation13], 4
          %s340 = int_to_ptr.vmem [resolvable:$true] %s339
          %345 = dma.hbm_to_vmem [thread:$0]  %s338, 512, %s340, [#allocation12], 128, 128, 8
        $region24: #{tpu_custom_call.1} parent=11 // pred_fallthru
          _
        // Predicated region
        $region25: #{tpu_custom_call.1} parent=11 // pred_check
          %p346 = pneg %p177
        $region26: #{tpu_custom_call.1} parent=11 // pred_check_branch
          %348 = sbr.rel (%p346) target = $region28
        $region27: #{tpu_custom_call.1} parent=11 // pred_region
          _
        $region28: #{tpu_custom_call.1} parent=11 // pred_fallthru
          _
        // Predicated region
        $region29: #{tpu_custom_call.1} parent=11 // pred_check
          %p349 = pneg %p198
        $region30: #{tpu_custom_call.1} parent=11 // pred_check_branch
          %351 = sbr.rel (%p349) target = $region32
        $region31: #{tpu_custom_call.1} parent=11 // pred_region
          _
        $region32: #{tpu_custom_call.1} parent=11 // pred_fallthru
          _
        // Predicated region
        $region33: #{tpu_custom_call.1} parent=11 // pred_check
          %p352 = pneg %p219
        $region34: #{tpu_custom_call.1} parent=11 // pred_check_branch
          %354 = sbr.rel (%p352) target = $region36
        $region35: #{tpu_custom_call.1} parent=11 // pred_region
          _
        $region36: #{tpu_custom_call.1} parent=11 // pred_fallthru
          _
        // Predicated region
        $region37: #{tpu_custom_call.1} parent=11 // pred_check
          %p355 = pneg %p240
        $region38: #{tpu_custom_call.1} parent=11 // pred_check_branch
          %357 = sbr.rel (%p355) target = $region40
        $region39: #{tpu_custom_call.1} parent=11 // pred_region
          %359 = vsyncadd [#allocation15], 0
          %s360 = sshll.u32 %s8, 4
          %s361 = int_to_ptr.hbm [resolvable:$true] %s360
          %s362 = sshll.u32 [#allocation14], 4
          %s363 = int_to_ptr.vmem [resolvable:$true] %s362
          %368 = dma.hbm_to_vmem [thread:$0]  %s361, 512, %s363, [#allocation15], 128, 128, 8
        $region40: #{tpu_custom_call.1} parent=11 // pred_fallthru
          _
        // Predicated region
        $region41: #{tpu_custom_call.1} parent=11 // pred_check
          %p369 = pneg %p261
        $region42: #{tpu_custom_call.1} parent=11 // pred_check_branch
          %371 = sbr.rel (%p369) target = $region44
        $region43: #{tpu_custom_call.1} parent=11 // pred_region
          _
        $region44: #{tpu_custom_call.1} parent=11 // pred_fallthru
          _
      $region12: #{tpu_custom_call.1} parent=5 // pred_fallthru
        _
      %p372 = scmp.lt.s32.totalorder %s27, 4
      // Predicated region
      $region45: #{tpu_custom_call.1} parent=5 // pred_check
        %p373 = pneg %p372
      $region46: #{tpu_custom_call.1} parent=5 // pred_check_branch
        %375 = sbr.rel (%p373) target = $region48
      $region47: #{tpu_custom_call.1} parent=5 // pred_region
        // Predicated region
        $region49: #{tpu_custom_call.1} parent=47 // pred_check
          %p376 = pneg %p61
        $region50: #{tpu_custom_call.1} parent=47 // pred_check_branch
          %378 = sbr.rel (%p376) target = $region52
        $region51: #{tpu_custom_call.1} parent=47 // pred_region
          %s379 = sand.u32 %s51, 1
          %s380 = scalar_lea.sflag [#allocation6], %s379
          %s381 = sand.u32 %s51, 1
          %s382 = smul.addr %s381, 8
          %s383 = scalar_lea.vmem [#allocation5], %s382
          %385 = vsyncadd %s380, 0
          %s386 = smul.addr %s34, 2
          %s387 = sadd.s32 %s35, %s386
          %s388 = smul.addr %s387, 8
          %s389 = scalar_lea.hbm %s0, %s388
          %s391 = sshll.u32 %s389, 4
          %s392 = int_to_ptr.hbm [resolvable:$true] %s391
          %s393 = sshll.u32 %s383, 4
          %s394 = int_to_ptr.vmem [resolvable:$true] %s393
          %396 = dma.hbm_to_vmem [thread:$0]  %s392, 128, %s394, %s380
        $region52: #{tpu_custom_call.1} parent=47 // pred_fallthru
          _
        // Predicated region
        $region53: #{tpu_custom_call.1} parent=47 // pred_check
          %p397 = pneg %p87
        $region54: #{tpu_custom_call.1} parent=47 // pred_check_branch
          %399 = sbr.rel (%p397) target = $region56
        $region55: #{tpu_custom_call.1} parent=47 // pred_region
          %s400 = sand.u32 %s27, 1
          %s401 = scalar_lea.sflag [#allocation9], %s400
          %s402 = sand.u32 %s77, 1
          %s403 = smul.addr %s402, 16
          %s404 = scalar_lea.vmem [#allocation8], %s403
          %406 = vsyncadd %s401, 0
          %s407 = smul.addr %s34, 2
          %s408 = smul.addr %s407, 8
          %s409 = scalar_lea.hbm %s1, %s408
          %s410 = sshll.u32 %s409, 4
          %s411 = int_to_ptr.hbm [resolvable:$true] %s410
          %s412 = sshll.u32 %s404, 4
          %s413 = int_to_ptr.vmem [resolvable:$true] %s412
          %418 = dma.hbm_to_vmem [thread:$0]  %s411, 256, %s413, %s401, 128, 128, 8
        $region56: #{tpu_custom_call.1} parent=47 // pred_fallthru
          _
      $region48: #{tpu_custom_call.1} parent=5 // pred_fallthru
        _
      %p419 = scmp.le.s32.totalorder 1, %s27
      %p420 = scmp.lt.s32.totalorder %s27, 5
      %p421 = pnand %p419, %p420
      %p422 = pneg %p421
      // Predicated region
      $region57: #{tpu_custom_call.1} parent=5 // pred_check
        _
      $region58: #{tpu_custom_call.1} parent=5 // pred_check_branch
        %424 = sbr.rel (%p421) target = $region60
      $region59: #{tpu_custom_call.1} parent=5 // pred_region
        %s425 = ssub.s32 %s27, 1
        %s426 = sand.u32 %s54, 1
        %s427 = scalar_lea.sflag [#allocation6], %s426
        %s428 = sand.u32 %s54, 1
        %s429 = smul.addr %s428, 8
        %s430 = scalar_lea.vmem [#allocation5], %s429
        // Predicated region
        $region61: #{tpu_custom_call.1} parent=59 // pred_check
          %p431 = pneg %p67
        $region62: #{tpu_custom_call.1} parent=59 // pred_check_branch
          %433 = sbr.rel (%p431) target = $region64
        $region63: #{tpu_custom_call.1} parent=59 // pred_region
          %435 = dma.done %s427, 128
        $region64: #{tpu_custom_call.1} parent=59 // pred_fallthru
          _
        %s436 = sand.u32 %s32, 1
        %s437 = scalar_lea.sflag [#allocation9], %s436
        %s438 = sand.u32 %s80, 1
        %s439 = smul.addr %s438, 16
        %s440 = scalar_lea.vmem [#allocation8], %s439
        // Predicated region
        $region65: #{tpu_custom_call.1} parent=59 // pred_check
          %p441 = pneg %p93
        $region66: #{tpu_custom_call.1} parent=59 // pred_check_branch
          %443 = sbr.rel (%p441) target = $region68
        $region67: #{tpu_custom_call.1} parent=59 // pred_region
          %445 = dma.done %s437, 256
        $region68: #{tpu_custom_call.1} parent=59 // pred_fallthru
          _
        // Predicated region
        $region69: #{tpu_custom_call.1} parent=59 // pred_check
          %p446 = pneg %p114
        $region70: #{tpu_custom_call.1} parent=59 // pred_check_branch
          %448 = sbr.rel (%p446) target = $region72
        $region71: #{tpu_custom_call.1} parent=59 // pred_region
          %450 = dma.done [#allocation9], 512
        $region72: #{tpu_custom_call.1} parent=59 // pred_fallthru
          _
        // Predicated region
        $region73: #{tpu_custom_call.1} parent=59 // pred_check
          %p451 = pneg %p135
        $region74: #{tpu_custom_call.1} parent=59 // pred_check_branch
          %453 = sbr.rel (%p451) target = $region76
        $region75: #{tpu_custom_call.1} parent=59 // pred_region
          %455 = dma.done [#allocation12], 512
        $region76: #{tpu_custom_call.1} parent=59 // pred_fallthru
          _
        // Predicated region
        $region77: #{tpu_custom_call.1} parent=59 // pred_check
          %p456 = pneg %p156
        $region78: #{tpu_custom_call.1} parent=59 // pred_check_branch
          %458 = sbr.rel (%p456) target = $region80
        $region79: #{tpu_custom_call.1} parent=59 // pred_region
          %460 = dma.done [#allocation12], 512
        $region80: #{tpu_custom_call.1} parent=59 // pred_fallthru
          _
        // Predicated region
        $region81: #{tpu_custom_call.1} parent=59 // pred_check
          %p461 = pneg %p240
        $region82: #{tpu_custom_call.1} parent=59 // pred_check_branch
          %463 = sbr.rel (%p461) target = $region84
        $region83: #{tpu_custom_call.1} parent=59 // pred_region
          %465 = dma.done [#allocation15], 512
        $region84: #{tpu_custom_call.1} parent=59 // pred_fallthru
          _
        %s466 = sand.u32 %s54, 1
        %s467 = scalar_lea.sflag [#allocation6], %s466
        %s468 = sand.u32 %s54, 1
        %s469 = smul.addr %s468, 8
        %s470 = scalar_lea.vmem [#allocation5], %s469
        %p471 = pneg %p67
        %p472 = pneg %p64
        %s473 = sand.u32 %s32, 1
        %s474 = scalar_lea.sflag [#allocation9], %s473
        %s475 = sand.u32 %s80, 1
        %s476 = smul.addr %s475, 16
        %s477 = scalar_lea.vmem [#allocation8], %s476
        %p478 = pneg %p93
        %p479 = pneg %p90
        %p480 = pneg %p114
        %p481 = pneg %p111
        %p482 = pneg %p135
        %p483 = pneg %p132
        %p484 = pneg %p156
        %p485 = pneg %p153
        %p486 = pneg %p177
        %p487 = pneg %p174
        %p488 = pneg %p198
        %p489 = pneg %p195
        %p490 = pneg %p219
        %p491 = pneg %p216
        %p492 = pneg %p240
        %p493 = pneg %p237
        %p494 = pneg %p261
        %p495 = pneg %p258
        %p496 = pneg %p289
        %p497 = pneg %p286
        %s498 = sand.u32 %s276, 1
        %s499 = scalar_lea.sflag [#allocation7], %s498
        %s500 = sand.u32 %s276, 1
        %s501 = smul.addr %s500, 8
        %s502 = scalar_lea.vmem [#allocation16], %s501
        %p503 = scmp.eq.s32.totalorder %s37, 0
        // Predicated region
        $region85: #{tpu_custom_call.1} parent=59 // pred_check
          %p504 = pneg %p503
        $region86: #{tpu_custom_call.1} parent=59 // pred_check_branch
          %506 = sbr.rel (%p504) target = $region88
        $region87: #{tpu_custom_call.1} parent=59 // pred_region
          %v507 = vld [vmem:[%s440] sm:$0xff]
          %v508 = vld [vmem:[%s440 + $0x8] sm:$0xff]
          %v509 = vld [vmem:[#allocation11] sm:$0xff]
          %v510 = vld [vmem:[#allocation11 + $0x8] sm:$0xff]
          %v511 = vld [vmem:[#allocation11 + $0x10] sm:$0xff]
          %v512 = vld [vmem:[#allocation11 + $0x18] sm:$0xff]
          %v513 = vld [vmem:[%s6] sm:$0x1]
          %v515 = vperm.slane %v513, 0
          %vm517 = vcmask 261120
          %v519 = vsel %vm517, %v507, 0
          %v522 = vsel %vm517, %v508, 0
          %524 = vmatpush.msra.mxu0 0.0
          %525 = vmatpush.msra.mxu0 0.0
          %526 = vmatpush.msra.mxu0 0.0
          %527 = vmatpush.msra.mxu0 0.0
          %528 = vmatpush.msra.mxu0 0.0
          %529 = vmatpush.msra.mxu0 0.0
          %530 = vmatpush.msra.mxu0 0.0
          %531 = vmatpush.msra.mxu0 0.0
          %532 = vmatpush.msra.mxu0 0.0
          %533 = vmatpush.msra.mxu0 0.0
          %534 = vmatpush.msra.mxu0 0.0
          %535 = vmatpush.msra.mxu0 0.0
          %536 = vmatpush.msra.mxu0 %v512
          %537 = vmatpush.msra.mxu0 %v511
          %538 = vmatpush.msra.mxu0 %v510
          %539 = vmatpush.msra.mxu0 %v509
          %540 = vmatmul.f32.gmra.mxu0 %v519
          %v541 = vpop.f32.mrf.mxu0
          %v542 = vadd.f32 %v515, %v541
          %543 = vmatmul.f32.gmra.mxu0 %v522
          %v544 = vpop.f32.mrf.mxu0
          %v545 = vadd.f32 %v515, %v544
          %546 = vdwg.mxu0
          %v547 = vld [vmem:[#allocation13] sm:$0xff]
          %v548 = vld [vmem:[#allocation13 + $0x8] sm:$0xff]
          %v549 = vld [vmem:[#allocation13 + $0x10] sm:$0xff]
          %v550 = vld [vmem:[#allocation13 + $0x18] sm:$0xff]
          %v551 = vld [vmem:[%s7] sm:$0x1]
          %v553 = vperm.slane %v551, 0
          %555 = vmatpush.msra.mxu0 0.0
          %556 = vmatpush.msra.mxu0 0.0
          %557 = vmatpush.msra.mxu0 0.0
          %558 = vmatpush.msra.mxu0 0.0
          %559 = vmatpush.msra.mxu0 0.0
          %560 = vmatpush.msra.mxu0 0.0
          %561 = vmatpush.msra.mxu0 0.0
          %562 = vmatpush.msra.mxu0 0.0
          %563 = vmatpush.msra.mxu0 0.0
          %564 = vmatpush.msra.mxu0 0.0
          %565 = vmatpush.msra.mxu0 0.0
          %566 = vmatpush.msra.mxu0 0.0
          %567 = vmatpush.msra.mxu0 %v550
          %568 = vmatpush.msra.mxu0 %v549
          %569 = vmatpush.msra.mxu0 %v548
          %570 = vmatpush.msra.mxu0 %v547
          %571 = vmatmul.f32.gmra.mxu0 %v519
          %v572 = vpop.f32.mrf.mxu0
          %v573 = vadd.f32 %v553, %v572
          %574 = vmatmul.f32.gmra.mxu0 %v522
          %v575 = vpop.f32.mrf.mxu0
          %v576 = vadd.f32 %v553, %v575
          %577 = vdwg.mxu0
          %578 = vst.msk [vmem:[#allocation2] sm:$0xff] %vm517, %v542
          %579 = vst.msk [vmem:[#allocation2 + $0x8] sm:$0xff] %vm517, %v545
          %580 = vst.msk [vmem:[#allocation3] sm:$0xff] %vm517, %v573
          %581 = vst.msk [vmem:[#allocation3 + $0x8] sm:$0xff] %vm517, %v576
        $region88: #{tpu_custom_call.1} parent=59 // pred_fallthru
          _
        %v582 = vld [vmem:[%s430] sm:$0xff]
        %v583 = vld [vmem:[#allocation10] sm:$0xff]
        %v584 = vld [vmem:[#allocation10 + $0x8] sm:$0xff]
        %v585 = vld [vmem:[#allocation10 + $0x10] sm:$0xff]
        %v586 = vld [vmem:[#allocation10 + $0x18] sm:$0xff]
        %v587 = vld [vmem:[%s5] sm:$0x1]
        %v589 = vperm.slane %v587, 0
        %vm591 = vcmask 261120
        %v593 = vsel %vm591, %v582, 0
        %595 = vmatpush.msra.mxu0 0.0
        %596 = vmatpush.msra.mxu0 0.0
        %597 = vmatpush.msra.mxu0 0.0
        %598 = vmatpush.msra.mxu0 0.0
        %599 = vmatpush.msra.mxu0 0.0
        %600 = vmatpush.msra.mxu0 0.0
        %601 = vmatpush.msra.mxu0 0.0
        %602 = vmatpush.msra.mxu0 0.0
        %603 = vmatpush.msra.mxu0 0.0
        %604 = vmatpush.msra.mxu0 0.0
        %605 = vmatpush.msra.mxu0 0.0
        %606 = vmatpush.msra.mxu0 0.0
        %607 = vmatpush.msra.mxu0 %v586
        %608 = vmatpush.msra.mxu0 %v585
        %609 = vmatpush.msra.mxu0 %v584
        %610 = vmatpush.msra.mxu0 %v583
        %611 = vmatmul.f32.gmra.mxu0 %v593
        %v612 = vpop.f32.mrf.mxu0
        %v613 = vadd.f32 %v589, %v612
        %614 = vdwg.mxu0
        %v615 = vmul.f32 %v613, 0.35355338
        loop: start=0, step=1, limit=2
        $region89: #{tpu_custom_call.1} parent=59 // loop_pre_header
          _
        $region90: #{tpu_custom_call.1} parent=59 // loop_header
          %s617 = sphi 0, %s621
          %p618 = scmp.ge.s32.totalorder %s617, 2
          %v622 = vphi -1e+30, %v660
          %v623 = vphi 0.0, %v671
          %v624 = vphi 0.0, %v696
        $region91: #{tpu_custom_call.1} parent=59 // loop_header_branch
          %620 = sbr.rel (%p618) target = $region95
        $region92: #{tpu_custom_call.1} parent=59 // loop_body
          %s625 = smul.u32 %s617, 8
          %s626 = scalar_lea.vmem [#allocation2], %s625
          %v627 = vld [vmem:[%s626] sm:$0xff]
          %s628 = scalar_lea.vmem [#allocation3], %s625
          %v629 = vld [vmem:[%s628] sm:$0xff]
          %vm630 = vcmask 64512
          %v632 = vsel %vm630, %v615, 0
          %v635 = vsel %vm630, %v627, 0
          %637 = vmatpush.xpose.msra.mxu0 0.0
          %638 = vmatpush.xpose.msra.mxu0 0.0
          %639 = vmatpush.xpose.msra.mxu0 0.0
          %640 = vmatpush.xpose.msra.mxu0 0.0
          %641 = vmatpush.xpose.msra.mxu0 0.0
          %642 = vmatpush.xpose.msra.mxu0 0.0
          %643 = vmatpush.xpose.msra.mxu0 0.0
          %644 = vmatpush.xpose.msra.mxu0 0.0
          %645 = vmatpush.xpose.msra.mxu0 0.0
          %646 = vmatpush.xpose.msra.mxu0 0.0
          %647 = vmatpush.xpose.msra.mxu0 0.0
          %648 = vmatpush.xpose.msra.mxu0 0.0
          %649 = vmatpush.xpose.msra.mxu0 0.0
          %650 = vmatpush.xpose.msra.mxu0 0.0
          %651 = vmatpush.xpose.msra.mxu0 0.0
          %652 = vmatpush.xpose.msra.mxu0 %v635
          %653 = vmatmul.f32.gmra.mxu0 %v632
          %v654 = vpop.f32.mrf.mxu0
          %v655 = vadd.f32 0.0, %v654
          %656 = vdwg.mxu0
          %v657 = vsel %vm630, %v655, -inf
          %658 = vmax.xlane.f32.xlu0 %v657
          %v659 = vpop.xlane.xlu0 %658
          %v660 = vmax.f32 %v622, %v659
          %v661 = vsub.f32 %v622, %v660
          %v662 = vmul.f32 %v661, 1.442695
          %v663 = vpow.pop %v662
          %v664 = vsub.f32 %v655, %v660
          %v665 = vmul.f32 %v664, 1.442695
          %v666 = vpow.pop %v665
          %v667 = vmul.f32 %v663, %v623
          %v668 = vsel %vm630, %v666, 0.0
          %669 = vadd.xlane.f32.xlu0 %v668
          %v670 = vpop.xlane.xlu0 %669
          %v671 = vadd.f32 %v667, %v670
          %v672 = vmul.f32 %v663, %v624
          %v674 = vsel %vm630, %v666, 0
          %676 = vmatpush.msra.mxu0 0.0
          %677 = vmatpush.msra.mxu0 0.0
          %678 = vmatpush.msra.mxu0 0.0
          %679 = vmatpush.msra.mxu0 0.0
          %680 = vmatpush.msra.mxu0 0.0
          %681 = vmatpush.msra.mxu0 0.0
          %682 = vmatpush.msra.mxu0 0.0
          %683 = vmatpush.msra.mxu0 0.0
          %684 = vmatpush.msra.mxu0 0.0
          %685 = vmatpush.msra.mxu0 0.0
          %686 = vmatpush.msra.mxu0 0.0
          %687 = vmatpush.msra.mxu0 0.0
          %688 = vmatpush.msra.mxu0 0.0
          %689 = vmatpush.msra.mxu0 0.0
          %690 = vmatpush.msra.mxu0 0.0
          %691 = vmatpush.msra.mxu0 %v629
          %692 = vmatmul.f32.gmra.mxu0 %v674
          %v693 = vpop.f32.mrf.mxu0
          %v694 = vadd.f32 0.0, %v693
          %695 = vdwg.mxu0
          %v696 = vadd.f32 %v672, %v694
        $region93: #{tpu_custom_call.1} parent=59 // loop_footer
          %s621 = sadd.s32 1, %s617
        $region94: #{tpu_custom_call.1} parent=59 // loop_footer_branch
          %616 = sbr.rel target = $region90
        $region95: #{tpu_custom_call.1} parent=59 // loop_exit
          _
        %v697 = vrcp.pop %v623
        %v698 = vmul.f32 %v623, %v697
        %v699 = vsub.f32 1.0, %v698
        %v700 = vmul.f32 %v697, %v699
        %v701 = vadd.f32 %v697, %v700
        %vm702 = vweird.f32 %v623
        %vm703 = vweird.f32 %v697
        %vm704 = vmor %vm702, %vm703
        %v705 = vsel %vm704, %v697, %v701
        %v706 = vand.u32 2147483647, %v623
        %vm707 = vcmp.eq.f32.partialorder %v706, 8.507059e+37
        %v708 = vand.u32 %v623, 2147483648
        %v709 = vor.u32 1.1754944e-38, %v708
        %v710 = vsel %vm707, %v709, %v705
        %v711 = vmul.f32 %v624, %v710
        %vm712 = vcmask 64512
        %713 = vst.msk [vmem:[#allocation4] sm:$0xff] %vm712, %v711
        loop: start=0, step=1, limit=2
        $region96: #{tpu_custom_call.1} parent=59 // loop_pre_header
          _
        $region97: #{tpu_custom_call.1} parent=59 // loop_header
          %s715 = sphi 0, %s719
          %p716 = scmp.ge.s32.totalorder %s715, 2
          %v720 = vphi -1e+30, %v761
          %v721 = vphi 0.0, %v772
          %v722 = vphi 0.0, %v801
        $region98: #{tpu_custom_call.1} parent=59 // loop_header_branch
          %718 = sbr.rel (%p716) target = $region102
        $region99: #{tpu_custom_call.1} parent=59 // loop_body
          %s723 = smul.u32 %s715, 8
          %s724 = scalar_lea.vmem [#allocation2], %s723
          %v725 = vld [vmem:[%s724] sm:$0xff]
          %s726 = scalar_lea.vmem [#allocation3], %s723
          %v727 = vld [vmem:[%s726] sm:$0xff]
          %729 = vrot.lane.b32.xlu0 %v615, 120
          %v730 = vpop.permute.xlu0 %729
          %732 = vrot.lane.b32.xlu0 %v725, 120
          %v733 = vpop.permute.xlu0 %732
          %v734 = vsel %vm712, %v730, 0
          %v736 = vsel %vm712, %v733, 0
          %738 = vmatpush.xpose.msra.mxu0 0.0
          %739 = vmatpush.xpose.msra.mxu0 0.0
          %740 = vmatpush.xpose.msra.mxu0 0.0
          %741 = vmatpush.xpose.msra.mxu0 0.0
          %742 = vmatpush.xpose.msra.mxu0 0.0
          %743 = vmatpush.xpose.msra.mxu0 0.0
          %744 = vmatpush.xpose.msra.mxu0 0.0
          %745 = vmatpush.xpose.msra.mxu0 0.0
          %746 = vmatpush.xpose.msra.mxu0 0.0
          %747 = vmatpush.xpose.msra.mxu0 0.0
          %748 = vmatpush.xpose.msra.mxu0 0.0
          %749 = vmatpush.xpose.msra.mxu0 0.0
          %750 = vmatpush.xpose.msra.mxu0 0.0
          %751 = vmatpush.xpose.msra.mxu0 0.0
          %752 = vmatpush.xpose.msra.mxu0 0.0
          %753 = vmatpush.xpose.msra.mxu0 %v736
          %754 = vmatmul.f32.gmra.mxu0 %v734
          %v755 = vpop.f32.mrf.mxu0
          %v756 = vadd.f32 0.0, %v755
          %757 = vdwg.mxu0
          %v758 = vsel %vm712, %v756, -inf
          %759 = vmax.xlane.f32.xlu0 %v758
          %v760 = vpop.xlane.xlu0 %759
          %v761 = vmax.f32 %v720, %v760
          %v762 = vsub.f32 %v720, %v761
          %v763 = vmul.f32 %v762, 1.442695
          %v764 = vpow.pop %v763
          %v765 = vsub.f32 %v756, %v761
          %v766 = vmul.f32 %v765, 1.442695
          %v767 = vpow.pop %v766
          %v768 = vmul.f32 %v764, %v721
          %v769 = vsel %vm712, %v767, 0.0
          %770 = vadd.xlane.f32.xlu0 %v769
          %v771 = vpop.xlane.xlu0 %770
          %v772 = vadd.f32 %v768, %v771
          %v773 = vmul.f32 %v764, %v722
          %775 = vrot.lane.b32.xlu0 %v727, 120
          %v776 = vpop.permute.xlu0 %775
          %v779 = vsel %vm712, %v767, 0
          %781 = vmatpush.msra.mxu0 0.0
          %782 = vmatpush.msra.mxu0 0.0
          %783 = vmatpush.msra.mxu0 0.0
          %784 = vmatpush.msra.mxu0 0.0
          %785 = vmatpush.msra.mxu0 0.0
          %786 = vmatpush.msra.mxu0 0.0
          %787 = vmatpush.msra.mxu0 0.0
          %788 = vmatpush.msra.mxu0 0.0
          %789 = vmatpush.msra.mxu0 0.0
          %790 = vmatpush.msra.mxu0 0.0
          %791 = vmatpush.msra.mxu0 0.0
          %792 = vmatpush.msra.mxu0 0.0
          %793 = vmatpush.msra.mxu0 0.0
          %794 = vmatpush.msra.mxu0 0.0
          %795 = vmatpush.msra.mxu0 0.0
          %796 = vmatpush.msra.mxu0 %v776
          %797 = vmatmul.f32.gmra.mxu0 %v779
          %v798 = vpop.f32.mrf.mxu0
          %v799 = vadd.f32 0.0, %v798
          %800 = vdwg.mxu0
          %v801 = vadd.f32 %v773, %v799
        $region100: #{tpu_custom_call.1} parent=59 // loop_footer
          %s719 = sadd.s32 1, %s715
        $region101: #{tpu_custom_call.1} parent=59 // loop_footer_branch
          %714 = sbr.rel target = $region97
        $region102: #{tpu_custom_call.1} parent=59 // loop_exit
          _
        %v802 = vrcp.pop %v721
        %v803 = vmul.f32 %v721, %v802
        %v804 = vsub.f32 1.0, %v803
        %v805 = vmul.f32 %v802, %v804
        %v806 = vadd.f32 %v802, %v805
        %vm807 = vweird.f32 %v721
        %vm808 = vweird.f32 %v802
        %vm809 = vmor %vm807, %vm808
        %v810 = vsel %vm809, %v802, %v806
        %v811 = vand.u32 2147483647, %v721
        %vm812 = vcmp.eq.f32.partialorder %v811, 8.507059e+37
        %v813 = vand.u32 %v721, 2147483648
        %v814 = vor.u32 1.1754944e-38, %v813
        %v815 = vsel %vm812, %v814, %v810
        %v816 = vmul.f32 %v722, %v815
        %818 = vrot.lane.b32.xlu0 %v816, 8
        %v819 = vpop.permute.xlu0 %818
        %vm821 = vcmask 130112
        %822 = vst.msk [vmem:[#allocation4] sm:$0xff] %vm821, %v819
        loop: start=0, step=1, limit=2
        $region103: #{tpu_custom_call.1} parent=59 // loop_pre_header
          _
        $region104: #{tpu_custom_call.1} parent=59 // loop_header
          %s824 = sphi 0, %s828
          %p825 = scmp.ge.s32.totalorder %s824, 2
          %v829 = vphi -1e+30, %v870
          %v830 = vphi 0.0, %v881
          %v831 = vphi 0.0, %v910
        $region105: #{tpu_custom_call.1} parent=59 // loop_header_branch
          %827 = sbr.rel (%p825) target = $region109
        $region106: #{tpu_custom_call.1} parent=59 // loop_body
          %s832 = smul.u32 %s824, 8
          %s833 = scalar_lea.vmem [#allocation2], %s832
          %v834 = vld [vmem:[%s833] sm:$0xff]
          %s835 = scalar_lea.vmem [#allocation3], %s832
          %v836 = vld [vmem:[%s835] sm:$0xff]
          %838 = vrot.lane.b32.xlu0 %v615, 112
          %v839 = vpop.permute.xlu0 %838
          %841 = vrot.lane.b32.xlu0 %v834, 112
          %v842 = vpop.permute.xlu0 %841
          %v843 = vsel %vm712, %v839, 0
          %v845 = vsel %vm712, %v842, 0
          %847 = vmatpush.xpose.msra.mxu0 0.0
          %848 = vmatpush.xpose.msra.mxu0 0.0
          %849 = vmatpush.xpose.msra.mxu0 0.0
          %850 = vmatpush.xpose.msra.mxu0 0.0
          %851 = vmatpush.xpose.msra.mxu0 0.0
          %852 = vmatpush.xpose.msra.mxu0 0.0
          %853 = vmatpush.xpose.msra.mxu0 0.0
          %854 = vmatpush.xpose.msra.mxu0 0.0
          %855 = vmatpush.xpose.msra.mxu0 0.0
          %856 = vmatpush.xpose.msra.mxu0 0.0
          %857 = vmatpush.xpose.msra.mxu0 0.0
          %858 = vmatpush.xpose.msra.mxu0 0.0
          %859 = vmatpush.xpose.msra.mxu0 0.0
          %860 = vmatpush.xpose.msra.mxu0 0.0
          %861 = vmatpush.xpose.msra.mxu0 0.0
          %862 = vmatpush.xpose.msra.mxu0 %v845
          %863 = vmatmul.f32.gmra.mxu0 %v843
          %v864 = vpop.f32.mrf.mxu0
          %v865 = vadd.f32 0.0, %v864
          %866 = vdwg.mxu0
          %v867 = vsel %vm712, %v865, -inf
          %868 = vmax.xlane.f32.xlu0 %v867
          %v869 = vpop.xlane.xlu0 %868
          %v870 = vmax.f32 %v829, %v869
          %v871 = vsub.f32 %v829, %v870
          %v872 = vmul.f32 %v871, 1.442695
          %v873 = vpow.pop %v872
          %v874 = vsub.f32 %v865, %v870
          %v875 = vmul.f32 %v874, 1.442695
          %v876 = vpow.pop %v875
          %v877 = vmul.f32 %v873, %v830
          %v878 = vsel %vm712, %v876, 0.0
          %879 = vadd.xlane.f32.xlu0 %v878
          %v880 = vpop.xlane.xlu0 %879
          %v881 = vadd.f32 %v877, %v880
          %v882 = vmul.f32 %v873, %v831
          %884 = vrot.lane.b32.xlu0 %v836, 112
          %v885 = vpop.permute.xlu0 %884
          %v888 = vsel %vm712, %v876, 0
          %890 = vmatpush.msra.mxu0 0.0
          %891 = vmatpush.msra.mxu0 0.0
          %892 = vmatpush.msra.mxu0 0.0
          %893 = vmatpush.msra.mxu0 0.0
          %894 = vmatpush.msra.mxu0 0.0
          %895 = vmatpush.msra.mxu0 0.0
          %896 = vmatpush.msra.mxu0 0.0
          %897 = vmatpush.msra.mxu0 0.0
          %898 = vmatpush.msra.mxu0 0.0
          %899 = vmatpush.msra.mxu0 0.0
          %900 = vmatpush.msra.mxu0 0.0
          %901 = vmatpush.msra.mxu0 0.0
          %902 = vmatpush.msra.mxu0 0.0
          %903 = vmatpush.msra.mxu0 0.0
          %904 = vmatpush.msra.mxu0 0.0
          %905 = vmatpush.msra.mxu0 %v885
          %906 = vmatmul.f32.gmra.mxu0 %v888
          %v907 = vpop.f32.mrf.mxu0
          %v908 = vadd.f32 0.0, %v907
          %909 = vdwg.mxu0
          %v910 = vadd.f32 %v882, %v908
        $region107: #{tpu_custom_call.1} parent=59 // loop_footer
          %s828 = sadd.s32 1, %s824
        $region108: #{tpu_custom_call.1} parent=59 // loop_footer_branch
          %823 = sbr.rel target = $region104
        $region109: #{tpu_custom_call.1} parent=59 // loop_exit
          _
        %v911 = vrcp.pop %v830
        %v912 = vmul.f32 %v830, %v911
        %v913 = vsub.f32 1.0, %v912
        %v914 = vmul.f32 %v911, %v913
        %v915 = vadd.f32 %v911, %v914
        %vm916 = vweird.f32 %v830
        %vm917 = vweird.f32 %v911
        %vm918 = vmor %vm916, %vm917
        %v919 = vsel %vm918, %v911, %v915
        %v920 = vand.u32 2147483647, %v830
        %vm921 = vcmp.eq.f32.partialorder %v920, 8.507059e+37
        %v922 = vand.u32 %v830, 2147483648
        %v923 = vor.u32 1.1754944e-38, %v922
        %v924 = vsel %vm921, %v923, %v919
        %v925 = vmul.f32 %v831, %v924
        %927 = vrot.lane.b32.xlu0 %v925, 16
        %v928 = vpop.permute.xlu0 %927
        %vm930 = vcmask 195712
        %931 = vst.msk [vmem:[#allocation4] sm:$0xff] %vm930, %v928
        loop: start=0, step=1, limit=2
        $region110: #{tpu_custom_call.1} parent=59 // loop_pre_header
          _
        $region111: #{tpu_custom_call.1} parent=59 // loop_header
          %s933 = sphi 0, %s937
          %p934 = scmp.ge.s32.totalorder %s933, 2
          %v938 = vphi -1e+30, %v979
          %v939 = vphi 0.0, %v990
          %v940 = vphi 0.0, %v1019
        $region112: #{tpu_custom_call.1} parent=59 // loop_header_branch
          %936 = sbr.rel (%p934) target = $region116
        $region113: #{tpu_custom_call.1} parent=59 // loop_body
          %s941 = smul.u32 %s933, 8
          %s942 = scalar_lea.vmem [#allocation2], %s941
          %v943 = vld [vmem:[%s942] sm:$0xff]
          %s944 = scalar_lea.vmem [#allocation3], %s941
          %v945 = vld [vmem:[%s944] sm:$0xff]
          %947 = vrot.lane.b32.xlu0 %v615, 104
          %v948 = vpop.permute.xlu0 %947
          %950 = vrot.lane.b32.xlu0 %v943, 104
          %v951 = vpop.permute.xlu0 %950
          %v952 = vsel %vm712, %v948, 0
          %v954 = vsel %vm712, %v951, 0
          %956 = vmatpush.xpose.msra.mxu0 0.0
          %957 = vmatpush.xpose.msra.mxu0 0.0
          %958 = vmatpush.xpose.msra.mxu0 0.0
          %959 = vmatpush.xpose.msra.mxu0 0.0
          %960 = vmatpush.xpose.msra.mxu0 0.0
          %961 = vmatpush.xpose.msra.mxu0 0.0
          %962 = vmatpush.xpose.msra.mxu0 0.0
          %963 = vmatpush.xpose.msra.mxu0 0.0
          %964 = vmatpush.xpose.msra.mxu0 0.0
          %965 = vmatpush.xpose.msra.mxu0 0.0
          %966 = vmatpush.xpose.msra.mxu0 0.0
          %967 = vmatpush.xpose.msra.mxu0 0.0
          %968 = vmatpush.xpose.msra.mxu0 0.0
          %969 = vmatpush.xpose.msra.mxu0 0.0
          %970 = vmatpush.xpose.msra.mxu0 0.0
          %971 = vmatpush.xpose.msra.mxu0 %v954
          %972 = vmatmul.f32.gmra.mxu0 %v952
          %v973 = vpop.f32.mrf.mxu0
          %v974 = vadd.f32 0.0, %v973
          %975 = vdwg.mxu0
          %v976 = vsel %vm712, %v974, -inf
          %977 = vmax.xlane.f32.xlu0 %v976
          %v978 = vpop.xlane.xlu0 %977
          %v979 = vmax.f32 %v938, %v978
          %v980 = vsub.f32 %v938, %v979
          %v981 = vmul.f32 %v980, 1.442695
          %v982 = vpow.pop %v981
          %v983 = vsub.f32 %v974, %v979
          %v984 = vmul.f32 %v983, 1.442695
          %v985 = vpow.pop %v984
          %v986 = vmul.f32 %v982, %v939
          %v987 = vsel %vm712, %v985, 0.0
          %988 = vadd.xlane.f32.xlu0 %v987
          %v989 = vpop.xlane.xlu0 %988
          %v990 = vadd.f32 %v986, %v989
          %v991 = vmul.f32 %v982, %v940
          %993 = vrot.lane.b32.xlu0 %v945, 104
          %v994 = vpop.permute.xlu0 %993
          %v997 = vsel %vm712, %v985, 0
          %999 = vmatpush.msra.mxu0 0.0
          %1000 = vmatpush.msra.mxu0 0.0
          %1001 = vmatpush.msra.mxu0 0.0
          %1002 = vmatpush.msra.mxu0 0.0
          %1003 = vmatpush.msra.mxu0 0.0
          %1004 = vmatpush.msra.mxu0 0.0
          %1005 = vmatpush.msra.mxu0 0.0
          %1006 = vmatpush.msra.mxu0 0.0
          %1007 = vmatpush.msra.mxu0 0.0
          %1008 = vmatpush.msra.mxu0 0.0
          %1009 = vmatpush.msra.mxu0 0.0
          %1010 = vmatpush.msra.mxu0 0.0
          %1011 = vmatpush.msra.mxu0 0.0
          %1012 = vmatpush.msra.mxu0 0.0
          %1013 = vmatpush.msra.mxu0 0.0
          %1014 = vmatpush.msra.mxu0 %v994
          %1015 = vmatmul.f32.gmra.mxu0 %v997
          %v1016 = vpop.f32.mrf.mxu0
          %v1017 = vadd.f32 0.0, %v1016
          %1018 = vdwg.mxu0
          %v1019 = vadd.f32 %v991, %v1017
        $region114: #{tpu_custom_call.1} parent=59 // loop_footer
          %s937 = sadd.s32 1, %s933
        $region115: #{tpu_custom_call.1} parent=59 // loop_footer_branch
          %932 = sbr.rel target = $region111
        $region116: #{tpu_custom_call.1} parent=59 // loop_exit
          _
        %v1020 = vrcp.pop %v939
        %v1021 = vmul.f32 %v939, %v1020
        %v1022 = vsub.f32 1.0, %v1021
        %v1023 = vmul.f32 %v1020, %v1022
        %v1024 = vadd.f32 %v1020, %v1023
        %vm1025 = vweird.f32 %v939
        %vm1026 = vweird.f32 %v1020
        %vm1027 = vmor %vm1025, %vm1026
        %v1028 = vsel %vm1027, %v1020, %v1024
        %v1029 = vand.u32 2147483647, %v939
        %vm1030 = vcmp.eq.f32.partialorder %v1029, 8.507059e+37
        %v1031 = vand.u32 %v939, 2147483648
        %v1032 = vor.u32 1.1754944e-38, %v1031
        %v1033 = vsel %vm1030, %v1032, %v1028
        %v1034 = vmul.f32 %v940, %v1033
        %1036 = vrot.lane.b32.xlu0 %v1034, 24
        %v1037 = vpop.permute.xlu0 %1036
        %vm1039 = vcmask 261312
        %1040 = vst.msk [vmem:[#allocation4] sm:$0xff] %vm1039, %v1037
        %v1041 = vld [vmem:[#allocation4] sm:$0xff]
        %v1042 = vld [vmem:[#allocation14] sm:$0xff]
        %v1043 = vld [vmem:[#allocation14 + $0x8] sm:$0xff]
        %v1044 = vld [vmem:[#allocation14 + $0x10] sm:$0xff]
        %v1045 = vld [vmem:[#allocation14 + $0x18] sm:$0xff]
        %v1046 = vld [vmem:[%s9] sm:$0x1]
        %v1048 = vperm.slane %v1046, 0
        %v1051 = vsel %vm591, %v1041, 0
        %1053 = vmatpush.msra.mxu0 0.0
        %1054 = vmatpush.msra.mxu0 0.0
        %1055 = vmatpush.msra.mxu0 0.0
        %1056 = vmatpush.msra.mxu0 0.0
        %1057 = vmatpush.msra.mxu0 0.0
        %1058 = vmatpush.msra.mxu0 0.0
        %1059 = vmatpush.msra.mxu0 0.0
        %1060 = vmatpush.msra.mxu0 0.0
        %1061 = vmatpush.msra.mxu0 0.0
        %1062 = vmatpush.msra.mxu0 0.0
        %1063 = vmatpush.msra.mxu0 0.0
        %1064 = vmatpush.msra.mxu0 0.0
        %1065 = vmatpush.msra.mxu0 %v1045
        %1066 = vmatpush.msra.mxu0 %v1044
        %1067 = vmatpush.msra.mxu0 %v1043
        %1068 = vmatpush.msra.mxu0 %v1042
        %1069 = vmatmul.f32.gmra.mxu0 %v1051
        %v1070 = vpop.f32.mrf.mxu0
        %v1071 = vadd.f32 %v1048, %v1070
        %1072 = vdwg.mxu0
        %1073 = vst.msk [vmem:[%s502] sm:$0xff] %vm591, %v1071
        %s1074 = sand.u32 %s276, 1
        %s1075 = scalar_lea.sflag [#allocation7], %s1074
        %s1076 = sand.u32 %s276, 1
        %s1077 = smul.addr %s1076, 8
        %s1078 = scalar_lea.vmem [#allocation16], %s1077
        // Predicated region
        $region117: #{tpu_custom_call.1} parent=59 // pred_check
          %p1079 = pneg %p286
        $region118: #{tpu_custom_call.1} parent=59 // pred_check_branch
          %1081 = sbr.rel (%p1079) target = $region120
        $region119: #{tpu_custom_call.1} parent=59 // pred_region
          %1083 = vsyncadd %s1075, 0
          %s1084 = smul.addr %s36, 2
          %s1085 = sadd.s32 %s37, %s1084
          %s1086 = smul.addr %s1085, 8
          %s1087 = scalar_lea.hbm %s10, %s1086
          %s1089 = sshll.u32 %s1078, 4
          %s1090 = int_to_ptr.vmem [resolvable:$true] %s1089
          %s1091 = sshll.u32 %s1087, 4
          %s1092 = int_to_ptr.hbm [resolvable:$true] %s1091
          %1094 = dma.vmem_to_hbm [thread:$0]  %s1090, 128, %s1092, %s1075
        $region120: #{tpu_custom_call.1} parent=59 // pred_fallthru
          _
      $region60: #{tpu_custom_call.1} parent=5 // pred_fallthru
        _
      %p1095 = scmp.le.s32.totalorder 2, %s27
      // Predicated region
      $region121: #{tpu_custom_call.1} parent=5 // pred_check
        %p1096 = pneg %p1095
      $region122: #{tpu_custom_call.1} parent=5 // pred_check_branch
        %1098 = sbr.rel (%p1096) target = $region124
      $region123: #{tpu_custom_call.1} parent=5 // pred_region
        %s1099 = ssub.s32 %s27, 2
        // Predicated region
        $region125: #{tpu_custom_call.1} parent=123 // pred_check
          %p1100 = pneg %p292
        $region126: #{tpu_custom_call.1} parent=123 // pred_check_branch
          %1102 = sbr.rel (%p1100) target = $region128
        $region127: #{tpu_custom_call.1} parent=123 // pred_region
          %s1103 = sand.u32 %s277, 1
          %s1104 = scalar_lea.sflag [#allocation7], %s1103
          %s1105 = sand.u32 %s277, 1
          %s1106 = smul.addr %s1105, 8
          %s1107 = scalar_lea.vmem [#allocation16], %s1106
          %1109 = dma.done %s1104, 128
        $region128: #{tpu_custom_call.1} parent=123 // pred_fallthru
          _
      $region124: #{tpu_custom_call.1} parent=5 // pred_fallthru
        _
    $region6: #{tpu_custom_call.1} parent=1 // loop_footer
      %s31 = sadd.s32 1, %s27
    $region7: #{tpu_custom_call.1} parent=1 // loop_footer_branch
      %26 = sbr.rel target = $region3
    $region8: #{tpu_custom_call.1} parent=1 // loop_exit
      _
    %1110 = vsyncpa [#allocation6], 1
    %s1111 = scalar_lea.sflag [#allocation6], 1
    %1112 = vsyncpa %s1111, 1
    %1113 = vsyncpa [#allocation9], 1
    %s1114 = scalar_lea.sflag [#allocation9], 1
    %1115 = vsyncpa %s1114, 1
    %1116 = vsyncpa [#allocation12], 1
    %1117 = vsyncpa [#allocation15], 1
    %1118 = vsyncpa [#allocation7], 1
    %s1119 = scalar_lea.sflag [#allocation7], 1
    %1120 = vsyncpa %s1119, 1

</llo_original>
